<compile_context>
chip_gen: v7x
topology: tpu7x:2x2x1
jax: 0.10.0
libtpu: 0.0.40
codegen_flags: <defaults>
</compile_context>

<pallas_src>
import jax
import jax.numpy as jnp
from jax.experimental import pallas as pl
from jax.experimental.pallas import tpu as pltpu

C_TRUNK = 160    # MobileNetV3-Large: channels out of the last inverted-residual block
C_FEAT = 960     # MobileNetV3-Large: backbone feature width (final 1x1 conv, BN folded)
EMB_DIM = 128    # nn.Linear(960, embedding_dim=128)


def _round_up(x, m):
    return ((x + m - 1) // m) * m


def _make_embed_kernel(TB, TP, P_true, P_pad):
    """Fused: 1x1 conv (+bias) -> hardswish -> global avg pool -> embedding Linear."""
    inv_p = 1.0 / float(P_true)
    n_pad = P_pad - P_true   # zero-padded positions; they all land in the last P tile

    def kernel(feat_ref, w1_ref, b1_ref, w2_ref, b2_ref, out_ref, acc_ref):
        p = pl.program_id(1)

        @pl.when(p == 0)
        def _init():
            acc_ref[...] = jnp.zeros_like(acc_ref)

        # (TB, TP, 160) bf16 -> (TB*TP, 160); TP is a multiple of 16 so the merge is layout-free.
        feat = feat_ref[...].reshape(TB * TP, C_TRUNK)
        # pointwise conv == matmul over positions; bf16 inputs, f32 MXU accumulation.
        h = jnp.dot(feat, w1_ref[...], preferred_element_type=jnp.float32) + b1_ref[...]
        # hardswish(x) = x * relu6(x + 3) / 6  (MobileNetV3 activation), kept in f32
        h = h * jnp.clip(h + 3.0, 0.0, 6.0) * (1.0 / 6.0)
        # pooled-sum accumulator (TB, 960) f32 — padded rows included, corrected at finalize
        acc_ref[...] += jnp.sum(h.reshape(TB, TP, C_FEAT), axis=1)

        @pl.when(p == pl.num_programs(1) - 1)
        def _finalize():
            acc = acc_ref[...]
            if n_pad:
                # zero feat rows contribute exactly hardswish(b1) each; subtract once here
                # instead of masking every element in the hot loop.
                b1 = b1_ref[...]
                hsw_b1 = b1 * jnp.clip(b1 + 3.0, 0.0, 6.0) * (1.0 / 6.0)
                acc = acc - float(n_pad) * hsw_b1
            pooled = acc * inv_p                       # divide by true (unpadded) P
            out_ref[...] = (jnp.dot(pooled, w2_ref[...],
                                    preferred_element_type=jnp.float32) + b2_ref[...])

    return kernel


def embed_head(feat, w1_bf16, b1, w_emb_t, b_emb, *, row_target=2048):
    """feat: (B, P, C_TRUNK).  w_emb_t is the embedding weight pre-transposed to (960, 128)."""
    B, P, Cin = feat.shape
    assert Cin == C_TRUNK

    # batch tile: whole batch when small, else a multiple-of-8 divisor (keeps out-block legal)
    TB = B if (B <= 8 or B % 8 != 0) else 8
    # position tile: multiple of 16 (bf16 sublane pack), ~row_target rows per step to keep the
    # MXU fed while staying well inside scoped VMEM (h tile at 2048 rows is ~7.5 MiB f32).
    tp_cap = max(16, ((row_target // TB) // 16) * 16)
    TP = min(_round_up(P, 16), tp_cap)
    P_pad = _round_up(P, TP)

    feat = feat.astype(jnp.bfloat16)
    if P_pad != P:
        feat = jnp.pad(feat, ((0, 0), (0, P_pad - P), (0, 0)))

    grid = (B // TB, P_pad // TP)

    flops = 2 * B * P_pad * C_TRUNK * C_FEAT + 2 * B * C_FEAT * EMB_DIM
    bytes_accessed = (B * P_pad * C_TRUNK * 2            # feat (bf16)
                      + C_TRUNK * C_FEAT * 2             # w1 (bf16)
                      + (C_FEAT + C_FEAT * EMB_DIM + EMB_DIM) * 4
                      + B * EMB_DIM * 4)

    kernel = _make_embed_kernel(TB, TP, P, P_pad)

    return pl.pallas_call(
        kernel,
        out_shape=jax.ShapeDtypeStruct((B, EMB_DIM), jnp.float32),
        grid_spec=pltpu.PrefetchScalarGridSpec(
            num_scalar_prefetch=0,
            grid=grid,
            in_specs=[
                # feat: streamed / double-buffered per (batch, position) tile
                pl.BlockSpec((TB, TP, C_TRUNK), lambda b, p: (b, p, 0)),
                # weights & biases: constant block index -> DMA'd once, resident across P loop
                pl.BlockSpec((C_TRUNK, C_FEAT), lambda b, p: (0, 0)),
                pl.BlockSpec((1, C_FEAT), lambda b, p: (0, 0)),
                pl.BlockSpec((C_FEAT, EMB_DIM), lambda b, p: (0, 0)),
                pl.BlockSpec((1, EMB_DIM), lambda b, p: (0, 0)),
            ],
            out_specs=pl.BlockSpec((TB, EMB_DIM), lambda b, p: (b, 0)),
            scratch_shapes=[pltpu.VMEM((TB, C_FEAT), jnp.float32)],
        ),
        compiler_params=pltpu.CompilerParams(
            dimension_semantics=("parallel", "arbitrary"),   # batch across TCs (megacore)
            vmem_limit_bytes=64 * 1024 * 1024,
        ),
        cost_estimate=pl.CostEstimate(flops=flops, transcendentals=0,
                                      bytes_accessed=bytes_accessed),
    )(feat, w1_bf16, b1.reshape(1, C_FEAT), w_emb_t, b_emb.reshape(1, EMB_DIM))


def stub_trunk(x_nchw, w_proj, b_proj):
    # TODO(synk): the pretrained MobileNetV3-Large conv trunk (16 inverted-residual blocks of
    # depthwise convs, squeeze-excite, batch-norm, hardswish) has no compact Pallas translation
    # here; a deterministic patch-average + 1x1 projection stands in to produce (B, P, 160).
    x = jnp.transpose(x_nchw, (0, 2, 3, 1))                          # NCHW -> NHWC
    B, H, W, C = x.shape
    ph = pw = 8
    x = x.reshape(B, H // ph, ph, W // pw, pw, C).mean(axis=(2, 4))  # (B, h, w, 3)
    feat = jax.nn.relu(jnp.einsum("bhwc,cd->bhwd", x, w_proj) + b_proj)
    return feat.reshape(B, -1, C_TRUNK)                              # (B, P, 160)


def prepare_head_params(params):
    """One-time prep: pre-transpose the embedding weight, pre-cast w1 to bf16."""
    return {
        "w1_bf16": params["w1"].astype(jnp.bfloat16),
        "b1": params["b1"],
        "w_emb_t": jnp.asarray(params["w_emb"].T),   # (960, 128)
        "b_emb": params["b_emb"],
    }


def embedding_model(x_nchw, params, head_params, *, row_target=2048):
    feat = stub_trunk(x_nchw, params["w_proj"], params["b_proj"])
    return embed_head(feat, head_params["w1_bf16"], head_params["b1"],
                      head_params["w_emb_t"], head_params["b_emb"],
                      row_target=row_target)


def _reference(x_nchw, params):
    """Pure-JAX f32 reference for the head (same stub trunk)."""
    feat = stub_trunk(x_nchw, params["w_proj"], params["b_proj"])
    h = jnp.einsum("bpc,cd->bpd", feat, params["w1"]) + params["b1"]
    h = h * jnp.clip(h + 3.0, 0.0, 6.0) / 6.0
    pooled = jnp.mean(h, axis=1)
    return pooled @ params["w_emb"].T + params["b_emb"]


def init_params(key):
    k = jax.random.split(key, 6)
    return {
        # stand-in trunk projection (3 -> 160)
        "w_proj": jax.random.normal(k[0], (3, C_TRUNK), jnp.float32) * 0.1,
        "b_proj": jax.random.normal(k[1], (C_TRUNK,), jnp.float32) * 0.01,
        # final 1x1 conv of the backbone (BN folded), 160 -> 960
        "w1": jax.random.normal(k[2], (C_TRUNK, C_FEAT), jnp.float32) * 0.05,
        "b1": jax.random.normal(k[3], (C_FEAT,), jnp.float32) * 0.01,
        # embedding Linear(960 -> 128), PyTorch (out, in) convention
        "w_emb": jax.random.normal(k[4], (EMB_DIM, C_FEAT), jnp.float32) * 0.02,
        "b_emb": jax.random.normal(k[5], (EMB_DIM,), jnp.float32) * 0.01,
    }


if __name__ == "__main__":
    key = jax.random.PRNGKey(0)
    pkey, xkey = jax.random.split(key)
    params = init_params(pkey)
    head = prepare_head_params(params)

    # Small NCHW image input consistent with the module. 48x48 -> 6x6 = 36 positions;
    # row_target=32 forces TP=16 so the multi-tile P accumulation AND the ragged
    # (zero-padded) last-tile correction path are both exercised.
    x = jax.random.normal(xkey, (2, 3, 48, 48), jnp.float32)

    run = jax.jit(lambda xx: embedding_model(xx, params, head, row_target=32))
    out = jax.block_until_ready(run(x))
    assert out.shape == (2, EMB_DIM) and out.dtype == jnp.float32

    ref = jax.block_until_ready(_reference(x, params))
    max_err = float(jnp.max(jnp.abs(out - ref)))
    # tolerance sized for bf16 inputs on matmul 1 (pool + matmul 2 stay f32)
    assert jnp.allclose(out, ref, atol=2e-3, rtol=2e-2), f"mismatch vs reference: {max_err}"

    print("KERNEL_OK")
</pallas_src>

<mosaic_0001>
module attributes {stable_mosaic.version = 11 : i64} {
  func.func @kernel(%arg0: i32, %arg1: i32, %arg2: memref<2x16x160xbf16, #tpu.memory_space<vmem>>, %arg3: memref<160x960xbf16, #tpu.memory_space<vmem>>, %arg4: memref<1x960xf32, #tpu.memory_space<vmem>>, %arg5: memref<960x128xf32, #tpu.memory_space<vmem>>, %arg6: memref<1x128xf32, #tpu.memory_space<vmem>>, %arg7: memref<2x128xf32, #tpu.memory_space<vmem>>, %arg8: memref<2x960xf32, #tpu.memory_space<vmem>>) attributes {dimension_semantics = [#tpu.dimension_semantics<parallel>, #tpu.dimension_semantics<arbitrary>], iteration_bounds = array<i64: 1, 3>, scalar_prefetch = 0 : i64, scratch_operands = 1 : i64, tpu.core_type = #tpu.core_type<tc>, window_params = [{transform_indices = @transform_0, window_bounds = array<i64: 2, 16, 160>}, {pipeline_mode = #tpu.pipeline_mode<synchronous>, transform_indices = @transform_1, window_bounds = array<i64: 160, 960>}, {pipeline_mode = #tpu.pipeline_mode<synchronous>, transform_indices = @transform_2, window_bounds = array<i64: 1, 960>}, {pipeline_mode = #tpu.pipeline_mode<synchronous>, transform_indices = @transform_3, window_bounds = array<i64: 960, 128>}, {pipeline_mode = #tpu.pipeline_mode<synchronous>, transform_indices = @transform_4, window_bounds = array<i64: 1, 128>}, {transform_indices = @transform_5, window_bounds = array<i64: 2, 128>}]} {
    %c0_i32 = arith.constant 0 : i32
    %0 = arith.cmpi eq, %arg1, %c0_i32 : i32
    %1 = arith.extui %0 : i1 to i32
    %c0_i32_0 = arith.constant 0 : i32
    %2 = arith.cmpi ne, %1, %c0_i32_0 : i32
    scf.if %2 {
      %cst_17 = arith.constant 0.000000e+00 : f32
      %27 = vector.broadcast %cst_17 : f32 to vector<2x960xf32>
      %c0_18 = arith.constant 0 : index
      %c0_19 = arith.constant 0 : index
      %28 = vector.load %arg8[%c0_18, %c0_19] : memref<2x960xf32, #tpu.memory_space<vmem>>, vector<2x960xf32>
      tpu.vector_store %arg8[%c0_18, %c0_19], %27 {strides = array<i32>} : memref<2x960xf32, #tpu.memory_space<vmem>>, vector<2x960xf32>,
    } else {
    }
    %c0 = arith.constant 0 : index
    %c0_1 = arith.constant 0 : index
    %c0_2 = arith.constant 0 : index
    %3 = vector.load %arg2[%c0, %c0_1, %c0_2] : memref<2x16x160xbf16, #tpu.memory_space<vmem>>, vector<2x16x160xbf16>
    %4 = vector.shape_cast %3 : vector<2x16x160xbf16> to vector<32x160xbf16>
    %c0_3 = arith.constant 0 : index
    %c0_4 = arith.constant 0 : index
    %5 = vector.load %arg3[%c0_3, %c0_4] : memref<160x960xbf16, #tpu.memory_space<vmem>>, vector<160x960xbf16>
    %cst = arith.constant dense<0.000000e+00> : vector<32x960xf32>
    %6 = tpu.matmul %4, %5, %cst {dimension_numbers = #tpu.dot_dimension_numbers<[1], [0], [0], [1], [0, 0, 1, 1], [], []>} : vector<32x160xbf16>, vector<160x960xbf16>, vector<32x960xf32> -> vector<32x960xf32>
    %c0_5 = arith.constant 0 : index
    %c0_6 = arith.constant 0 : index
    %7 = vector.load %arg4[%c0_5, %c0_6] : memref<1x960xf32, #tpu.memory_space<vmem>>, vector<1x960xf32>
    %8 = vector.broadcast %7 : vector<1x960xf32> to vector<32x960xf32>
    %9 = arith.addf %6, %8 : vector<32x960xf32>
    %cst_7 = arith.constant 3.000000e+00 : f32
    %10 = vector.broadcast %cst_7 : f32 to vector<32x960xf32>
    %11 = arith.addf %9, %10 : vector<32x960xf32>
    %cst_8 = arith.constant 0.000000e+00 : f32
    %cst_9 = arith.constant 6.000000e+00 : f32
    %12 = vector.broadcast %cst_8 : f32 to vector<32x960xf32>
    %13 = arith.maximumf %12, %11 : vector<32x960xf32>
    %14 = vector.broadcast %cst_9 : f32 to vector<32x960xf32>
    %15 = arith.minimumf %14, %13 : vector<32x960xf32>
    %16 = arith.mulf %9, %15 : vector<32x960xf32>
    %cst_10 = arith.constant 0.166666672 : f32
    %17 = vector.broadcast %cst_10 : f32 to vector<32x960xf32>
    %18 = arith.mulf %16, %17 : vector<32x960xf32>
    %c0_11 = arith.constant 0 : index
    %c0_12 = arith.constant 0 : index
    %19 = vector.load %arg8[%c0_11, %c0_12] : memref<2x960xf32, #tpu.memory_space<vmem>>, vector<2x960xf32>
    %20 = vector.shape_cast %18 : vector<32x960xf32> to vector<2x16x960xf32>
    %cst_13 = arith.constant dense<0.000000e+00> : vector<2x960xf32>
    %21 = vector.multi_reduction <add>, %20, %cst_13 [1] : vector<2x16x960xf32> to vector<2x960xf32>
    %22 = arith.addf %19, %21 : vector<2x960xf32>
    %c0_14 = arith.constant 0 : index
    %c0_15 = arith.constant 0 : index
    %23 = vector.load %arg8[%c0_14, %c0_15] : memref<2x960xf32, #tpu.memory_space<vmem>>, vector<2x960xf32>
    tpu.vector_store %arg8[%c0_14, %c0_15], %22 {strides = array<i32>} : memref<2x960xf32, #tpu.memory_space<vmem>>, vector<2x960xf32>,
    %c2_i32 = arith.constant 2 : i32
    %24 = arith.cmpi eq, %arg1, %c2_i32 : i32
    %25 = arith.extui %24 : i1 to i32
    %c0_i32_16 = arith.constant 0 : i32
    %26 = arith.cmpi ne, %25, %c0_i32_16 : i32
    scf.if %26 {
      %c0_17 = arith.constant 0 : index
      %c0_18 = arith.constant 0 : index
      %27 = vector.load %arg8[%c0_17, %c0_18] : memref<2x960xf32, #tpu.memory_space<vmem>>, vector<2x960xf32>
      %c0_19 = arith.constant 0 : index
      %c0_20 = arith.constant 0 : index
      %28 = vector.load %arg4[%c0_19, %c0_20] : memref<1x960xf32, #tpu.memory_space<vmem>>, vector<1x960xf32>
      %cst_21 = arith.constant 3.000000e+00 : f32
      %29 = vector.broadcast %cst_21 : f32 to vector<1x960xf32>
      %30 = arith.addf %28, %29 : vector<1x960xf32>
      %cst_22 = arith.constant 0.000000e+00 : f32
      %cst_23 = arith.constant 6.000000e+00 : f32
      %31 = vector.broadcast %cst_22 : f32 to vector<1x960xf32>
      %32 = arith.maximumf %31, %30 : vector<1x960xf32>
      %33 = vector.broadcast %cst_23 : f32 to vector<1x960xf32>
      %34 = arith.minimumf %33, %32 : vector<1x960xf32>
      %35 = arith.mulf %28, %34 : vector<1x960xf32>
      %cst_24 = arith.constant 0.166666672 : f32
      %36 = vector.broadcast %cst_24 : f32 to vector<1x960xf32>
      %37 = arith.mulf %35, %36 : vector<1x960xf32>
      %cst_25 = arith.constant 1.200000e+01 : f32
      %38 = vector.broadcast %cst_25 : f32 to vector<1x960xf32>
      %39 = arith.mulf %38, %37 : vector<1x960xf32>
      %40 = vector.broadcast %39 : vector<1x960xf32> to vector<2x960xf32>
      %41 = arith.subf %27, %40 : vector<2x960xf32>
      %cst_26 = arith.constant 0.027777778 : f32
      %42 = vector.broadcast %cst_26 : f32 to vector<2x960xf32>
      %43 = arith.mulf %41, %42 : vector<2x960xf32>
      %c0_27 = arith.constant 0 : index
      %c0_28 = arith.constant 0 : index
      %44 = vector.load %arg5[%c0_27, %c0_28] : memref<960x128xf32, #tpu.memory_space<vmem>>, vector<960x128xf32>
      %cst_29 = arith.constant dense<0.000000e+00> : vector<2x128xf32>
      %45 = tpu.matmul %43, %44, %cst_29 {dimension_numbers = #tpu.dot_dimension_numbers<[1], [0], [0], [1], [0, 0, 1, 1], [], []>} : vector<2x960xf32>, vector<960x128xf32>, vector<2x128xf32> -> vector<2x128xf32>
      %c0_30 = arith.constant 0 : index
      %c0_31 = arith.constant 0 : index
      %46 = vector.load %arg6[%c0_30, %c0_31] : memref<1x128xf32, #tpu.memory_space<vmem>>, vector<1x128xf32>
      %47 = vector.broadcast %46 : vector<1x128xf32> to vector<2x128xf32>
      %48 = arith.addf %45, %47 : vector<2x128xf32>
      %c0_32 = arith.constant 0 : index
      %c0_33 = arith.constant 0 : index
      %49 = vector.load %arg7[%c0_32, %c0_33] : memref<2x128xf32, #tpu.memory_space<vmem>>, vector<2x128xf32>
      tpu.vector_store %arg7[%c0_32, %c0_33], %48 {strides = array<i32>} : memref<2x128xf32, #tpu.memory_space<vmem>>, vector<2x128xf32>,
    } else {
    }
    return
  }
  func.func @transform_0(%arg0: i32, %arg1: i32) -> (i32, i32, i32) {
    %c0_i32 = arith.constant 0 : i32
    %c0_i32_0 = arith.constant 0 : i32
    return %arg0, %arg1, %c0_i32 : i32, i32, i32
  }
  func.func @transform_1(%arg0: i32, %arg1: i32) -> (i32, i32) {
    %c0_i32 = arith.constant 0 : i32
    %c0_i32_0 = arith.constant 0 : i32
    %c0_i32_1 = arith.constant 0 : i32
    return %c0_i32, %c0_i32_0 : i32, i32
  }
  func.func @transform_2(%arg0: i32, %arg1: i32) -> (i32, i32) {
    %c0_i32 = arith.constant 0 : i32
    %c0_i32_0 = arith.constant 0 : i32
    %c0_i32_1 = arith.constant 0 : i32
    return %c0_i32, %c0_i32_0 : i32, i32
  }
  func.func @transform_3(%arg0: i32, %arg1: i32) -> (i32, i32) {
    %c0_i32 = arith.constant 0 : i32
    %c0_i32_0 = arith.constant 0 : i32
    %c0_i32_1 = arith.constant 0 : i32
    return %c0_i32, %c0_i32_0 : i32, i32
  }
  func.func @transform_4(%arg0: i32, %arg1: i32) -> (i32, i32) {
    %c0_i32 = arith.constant 0 : i32
    %c0_i32_0 = arith.constant 0 : i32
    %c0_i32_1 = arith.constant 0 : i32
    return %c0_i32, %c0_i32_0 : i32, i32
  }
  func.func @transform_5(%arg0: i32, %arg1: i32) -> (i32, i32) {
    %c0_i32 = arith.constant 0 : i32
    %c0_i32_0 = arith.constant 0 : i32
    return %arg0, %c0_i32 : i32, i32
  }
}

</mosaic_0001>

<llo_original>
// kernel: _lambda_.1
$region0: #{_lambda_.1}
  #allocation0 [shape = 'u32[]', space=smem, size = 0x4, offset = 0x4, fixed_abs, tag = 'smem constant byte address 0x4 - core index']
  #allocation1 [shape = 'u32[144,128]{1,0:T(1,128)}', space=vmem, size = 0x12000, scoped, tag = 'internal scratch']
  #allocation2 [shape = 'f32[2,960]{1,0:T(2,128)}', space=vmem, size = 0x2000, scoped, tag = 'scratch operand']
  #allocation13 [shape = 's32[]', space=sflag, size = 0x4, offset = 0, fixed_abs, tag = 'sflag constant byte address 0x0 - dummy sync flag']
  %s0 = inlined_call_operand.hbm [shape: bf16[2,48,160], index: 0, kind: input, shape index: {}]
  %s1 = inlined_call_operand.hbm [shape: bf16[160,960], index: 1, kind: input, shape index: {}]
  %s2 = inlined_call_operand.hbm [shape: f32[1,960], index: 2, kind: input, shape index: {}]
  %s3 = inlined_call_operand.hbm [shape: f32[960,128], index: 3, kind: input, shape index: {}]
  %s4 = inlined_call_operand.hbm [shape: f32[1,128], index: 4, kind: input, shape index: {}]
  %s5 = inlined_call_operand.hbm [shape: f32[2,128], index: 5, kind: output, shape index: {}]
  %s6 = sld [smem:[#allocation0]]
  $region81: #{_lambda_.1} parent=0
    _
  %s8 = ssub.s32 1, %s6
  %s9 = scalar_select 0, %s8, %s6
  $region1: #{_lambda_.1} parent=0
    #allocation3 [shape = 'u8[32768]{0}', space=vmem, size = 0x8000, scoped, tag = 'input window, operand 0']
    #allocation4 [shape = 's32[2]{0}', space=sflag, size = 0x8, scoped, tag = 'scoped memory for _lambda_.1']
    #allocation5 [shape = 's32[2]{0}', space=sflag, size = 0x8, scoped, tag = 'scoped memory for _lambda_.1']
    #allocation6 [shape = 'u8[327680]{0}', space=vmem, size = 0x50000, scoped, tag = 'input window, operand 1, single buffered']
    #allocation7 [shape = 's32[1]{0}', space=sflag, size = 0x4, scoped, tag = 'scoped memory for _lambda_.1']
    #allocation8 [shape = 'u8[4096]{0}', space=vmem, size = 0x1000, scoped, tag = 'input window, operand 2, single buffered']
    #allocation9 [shape = 'u8[491520]{0}', space=vmem, size = 0x78000, scoped, tag = 'input window, operand 3, single buffered']
    #allocation10 [shape = 's32[1]{0}', space=sflag, size = 0x4, scoped, tag = 'scoped memory for _lambda_.1']
    #allocation11 [shape = 'u8[512]{0}', space=vmem, size = 0x400, scoped, tag = 'input window, operand 4, single buffered']
    #allocation12 [shape = 'u8[1024]{0}', space=vmem, size = 0x400, scoped, tag = 'output window, operand 0, single buffered']
    %10 = vsyncpa [#allocation4], 0
    %s11 = scalar_lea.sflag [#allocation4], 1
    %12 = vsyncpa %s11, 0
    %13 = vsyncpa [#allocation7], 0
    %14 = vsyncpa [#allocation10], 0
    %15 = vsyncpa [#allocation5], 0
    loop: start=0, step=1, limit=5
    $region2: #{_lambda_.1} parent=1 // loop_pre_header
      _
    $region3: #{_lambda_.1} parent=1 // loop_header
      %s17 = sphi 0, %s21
      %p18 = scmp.ge.s32.totalorder %s17, 5
      %s24 = sphi 0, %s36
      %s25 = sphi 0, %s32
      %s26 = sphi 0, %s24
      %s27 = sphi 0, %s25
      %s28 = sphi 0, %s26
      %s29 = sphi 0, %s27
      %s41 = sphi 0, %s43
      %s44 = sphi 0, %s41
      %s45 = sphi 0, %s44
      %s61 = sphi 0, %s45
      %s65 = sphi 0, %s65
      %s67 = sphi 0, %s65
      %s68 = sphi 0, %s67
      %s82 = sphi 0, %s68
      %s86 = sphi 0, %s86
      %s88 = sphi 0, %s86
      %s89 = sphi 0, %s88
      %s103 = sphi 0, %s89
      %s107 = sphi 0, %s107
      %s109 = sphi 0, %s107
      %s110 = sphi 0, %s109
      %s124 = sphi 0, %s110
      %s128 = sphi 0, %s128
      %s130 = sphi 0, %s128
      %s131 = sphi 0, %s130
      %s145 = sphi 0, %s131
      %s151 = sphi 0, %s153
      %s154 = sphi 0, %s151
      %s155 = sphi 0, %s154
      %s171 = sphi 0, %s155
    $region4: #{_lambda_.1} parent=1 // loop_header_branch
      %20 = sbr.rel (%p18) target = $region8
    $region5: #{_lambda_.1} parent=1 // loop_body
      %s22 = ssub.s32 %s17, 1
      %s23 = ssub.s32 %s17, 2
      %s30 = sadd.s32 1, %s25
      %p31 = scmp.ge.s32.totalorder %s30, 3
      %s32 = scalar_select %p31, 0, %s30
      %s33 = sadd.s32 1, %s24
      %s34 = scalar_select %p31, %s33, %s24
      %p35 = scmp.ge.s32.totalorder %s34, 1
      %s36 = scalar_select %p35, 0, %s34
      %s37 = ssub.s32 %s24, %s36
      %s38 = ssub.s32 %s25, %s32
      %s39 = sor.u32 %s37, %s38
      %p40 = scmp.eq.s32.totalorder %s39, 0
      %s42 = sadd.s32 %s41, 1
      %s43 = scalar_select %p40, %s41, %s42
      %p46 = pneg %p40
      %p47 = scmp.eq.s32.totalorder %s17, 2
      %p48 = por %p46, %p47
      %p49 = scmp.ne.s32.totalorder %s41, %s44
      %p50 = scmp.eq.s32.totalorder %s17, 0
      %p51 = por %p49, %p50
      %p52 = scmp.ne.s32.totalorder %s41, %s44
      %p53 = scmp.eq.s32.totalorder %s22, 2
      %p54 = por %p52, %p53
      %p55 = scmp.ne.s32.totalorder %s44, %s45
      %p56 = scmp.eq.s32.totalorder %s22, 0
      %p57 = por %p55, %p56
      %p58 = scmp.ne.s32.totalorder %s44, %s45
      %p59 = scmp.eq.s32.totalorder %s23, 2
      %p60 = por %p58, %p59
      %p62 = scmp.ne.s32.totalorder %s45, %s61
      %p63 = scmp.eq.s32.totalorder %s23, 0
      %p64 = por %p62, %p63
      %s66 = sadd.s32 %s65, 1
      %p69 = scmp.eq.s32.totalorder %s17, 2
      %p70 = scmp.ne.s32.totalorder %s65, %s67
      %p71 = scmp.eq.s32.totalorder %s17, 0
      %p72 = por %p70, %p71
      %p73 = scmp.ne.s32.totalorder %s65, %s67
      %p74 = scmp.eq.s32.totalorder %s22, 2
      %p75 = por %p73, %p74
      %p76 = scmp.ne.s32.totalorder %s67, %s68
      %p77 = scmp.eq.s32.totalorder %s22, 0
      %p78 = por %p76, %p77
      %p79 = scmp.ne.s32.totalorder %s67, %s68
      %p80 = scmp.eq.s32.totalorder %s23, 2
      %p81 = por %p79, %p80
      %p83 = scmp.ne.s32.totalorder %s68, %s82
      %p84 = scmp.eq.s32.totalorder %s23, 0
      %p85 = por %p83, %p84
      %s87 = sadd.s32 %s86, 1
      %p90 = scmp.eq.s32.totalorder %s17, 2
      %p91 = scmp.ne.s32.totalorder %s86, %s88
      %p92 = scmp.eq.s32.totalorder %s17, 0
      %p93 = por %p91, %p92
      %p94 = scmp.ne.s32.totalorder %s86, %s88
      %p95 = scmp.eq.s32.totalorder %s22, 2
      %p96 = por %p94, %p95
      %p97 = scmp.ne.s32.totalorder %s88, %s89
      %p98 = scmp.eq.s32.totalorder %s22, 0
      %p99 = por %p97, %p98
      %p100 = scmp.ne.s32.totalorder %s88, %s89
      %p101 = scmp.eq.s32.totalorder %s23, 2
      %p102 = por %p100, %p101
      %p104 = scmp.ne.s32.totalorder %s89, %s103
      %p105 = scmp.eq.s32.totalorder %s23, 0
      %p106 = por %p104, %p105
      %s108 = sadd.s32 %s107, 1
      %p111 = scmp.eq.s32.totalorder %s17, 2
      %p112 = scmp.ne.s32.totalorder %s107, %s109
      %p113 = scmp.eq.s32.totalorder %s17, 0
      %p114 = por %p112, %p113
      %p115 = scmp.ne.s32.totalorder %s107, %s109
      %p116 = scmp.eq.s32.totalorder %s22, 2
      %p117 = por %p115, %p116
      %p118 = scmp.ne.s32.totalorder %s109, %s110
      %p119 = scmp.eq.s32.totalorder %s22, 0
      %p120 = por %p118, %p119
      %p121 = scmp.ne.s32.totalorder %s109, %s110
      %p122 = scmp.eq.s32.totalorder %s23, 2
      %p123 = por %p121, %p122
      %p125 = scmp.ne.s32.totalorder %s110, %s124
      %p126 = scmp.eq.s32.totalorder %s23, 0
      %p127 = por %p125, %p126
      %s129 = sadd.s32 %s128, 1
      %p132 = scmp.eq.s32.totalorder %s17, 2
      %p133 = scmp.ne.s32.totalorder %s128, %s130
      %p134 = scmp.eq.s32.totalorder %s17, 0
      %p135 = por %p133, %p134
      %p136 = scmp.ne.s32.totalorder %s128, %s130
      %p137 = scmp.eq.s32.totalorder %s22, 2
      %p138 = por %p136, %p137
      %p139 = scmp.ne.s32.totalorder %s130, %s131
      %p140 = scmp.eq.s32.totalorder %s22, 0
      %p141 = por %p139, %p140
      %p142 = scmp.ne.s32.totalorder %s130, %s131
      %p143 = scmp.eq.s32.totalorder %s23, 2
      %p144 = por %p142, %p143
      %p146 = scmp.ne.s32.totalorder %s131, %s145
      %p147 = scmp.eq.s32.totalorder %s23, 0
      %p148 = por %p146, %p147
      %s149 = ssub.s32 %s24, %s36
      %p150 = scmp.eq.s32.totalorder %s149, 0
      %s152 = sadd.s32 %s151, 1
      %s153 = scalar_select %p150, %s151, %s152
      %p156 = pneg %p150
      %p157 = scmp.eq.s32.totalorder %s17, 2
      %p158 = por %p156, %p157
      %p159 = scmp.ne.s32.totalorder %s151, %s154
      %p160 = scmp.eq.s32.totalorder %s17, 0
      %p161 = por %p159, %p160
      %p162 = scmp.ne.s32.totalorder %s151, %s154
      %p163 = scmp.eq.s32.totalorder %s22, 2
      %p164 = por %p162, %p163
      %p165 = scmp.ne.s32.totalorder %s154, %s155
      %p166 = scmp.eq.s32.totalorder %s22, 0
      %p167 = por %p165, %p166
      %p168 = scmp.ne.s32.totalorder %s154, %s155
      %p169 = scmp.eq.s32.totalorder %s23, 2
      %p170 = por %p168, %p169
      %p172 = scmp.ne.s32.totalorder %s155, %s171
      %p173 = scmp.eq.s32.totalorder %s23, 0
      %p174 = por %p172, %p173
      %p175 = scmp.le.s32.totalorder 1, %s17
      %p176 = scmp.lt.s32.totalorder %s17, 4
      %p177 = pnand %p175, %p176
      %p178 = pneg %p177
      // Predicated region
      $region9: #{_lambda_.1} parent=5 // pred_check
        _
      $region10: #{_lambda_.1} parent=5 // pred_check_branch
        %180 = sbr.rel (%p177) target = $region12
      $region11: #{_lambda_.1} parent=5 // pred_region
        %s181 = ssub.s32 %s17, 1
        // Predicated region
        $region13: #{_lambda_.1} parent=11 // pred_check
          %p182 = pneg %p78
        $region14: #{_lambda_.1} parent=11 // pred_check_branch
          %184 = sbr.rel (%p182) target = $region16
        $region15: #{_lambda_.1} parent=11 // pred_region
          %s186 = ssub.s32 10240, 10240
          %187 = vsyncadd [#allocation7], %s186
          %s188 = sshll.u32 [#allocation6], 4
          %s189 = int_to_ptr.vmem [resolvable:$true] %s188
          %194 = dma.hbm_to_vmem [thread:$0]  %s1, 10240, %s189, [#allocation7], 512, 512, 32
        $region16: #{_lambda_.1} parent=11 // pred_fallthru
          _
        // Predicated region
        $region17: #{_lambda_.1} parent=11 // pred_check
          %p195 = pneg %p99
        $region18: #{_lambda_.1} parent=11 // pred_check_branch
          %197 = sbr.rel (%p195) target = $region20
        $region19: #{_lambda_.1} parent=11 // pred_region
          %s199 = ssub.s32 128, 128
          %200 = vsyncadd [#allocation7], %s199
          %s202 = sshll.u32 [#allocation8], 4
          %s203 = int_to_ptr.vmem [resolvable:$true] %s202
          %205 = dma.hbm_to_vmem [thread:$0]  %s2, 128, %s203, [#allocation7]
        $region20: #{_lambda_.1} parent=11 // pred_fallthru
          _
        // Predicated region
        $region21: #{_lambda_.1} parent=11 // pred_check
          %p206 = pneg %p120
        $region22: #{_lambda_.1} parent=11 // pred_check_branch
          %208 = sbr.rel (%p206) target = $region24
        $region23: #{_lambda_.1} parent=11 // pred_region
          %s210 = ssub.s32 15360, 15360
          %211 = vsyncadd [#allocation10], %s210
          %s212 = sshll.u32 [#allocation9], 4
          %s213 = int_to_ptr.vmem [resolvable:$true] %s212
          %218 = dma.hbm_to_vmem [thread:$0]  %s3, 15360, %s213, [#allocation10], 128, 128, 8
        $region24: #{_lambda_.1} parent=11 // pred_fallthru
          _
        // Predicated region
        $region25: #{_lambda_.1} parent=11 // pred_check
          %p219 = pneg %p141
        $region26: #{_lambda_.1} parent=11 // pred_check_branch
          %221 = sbr.rel (%p219) target = $region28
        $region27: #{_lambda_.1} parent=11 // pred_region
          %s223 = ssub.s32 16, 16
          %224 = vsyncadd [#allocation10], %s223
          %s226 = sshll.u32 [#allocation11], 4
          %s227 = int_to_ptr.vmem [resolvable:$true] %s226
          %229 = dma.hbm_to_vmem [thread:$0]  %s4, 16, %s227, [#allocation10]
        $region28: #{_lambda_.1} parent=11 // pred_fallthru
          _
      $region12: #{_lambda_.1} parent=5 // pred_fallthru
        _
      %p230 = scmp.lt.s32.totalorder %s17, 3
      // Predicated region
      $region29: #{_lambda_.1} parent=5 // pred_check
        %p231 = pneg %p230
      $region30: #{_lambda_.1} parent=5 // pred_check_branch
        %233 = sbr.rel (%p231) target = $region32
      $region31: #{_lambda_.1} parent=5 // pred_region
        // Predicated region
        $region33: #{_lambda_.1} parent=31 // pred_check
          %p234 = pneg %p51
        $region34: #{_lambda_.1} parent=31 // pred_check_branch
          %236 = sbr.rel (%p234) target = $region36
        $region35: #{_lambda_.1} parent=31 // pred_region
          #allocation14 [shape = 'u32[6]{0}', space=smem, size = 0x18, scoped, tag = 'DMA stride descriptor']
          %s237 = sand.u32 %s41, 1
          %s238 = scalar_lea.sflag [#allocation4], %s237
          %s239 = sand.u32 %s41, 1
          %s240 = smul.addr %s239, 32
          %s241 = scalar_lea.vmem [#allocation3], %s240
          %s242 = smul.u32 2, %s24
          %s243 = smul.u32 2, %s25
          %s245 = ssub.s32 512, 512
          %246 = vsyncadd %s238, %s245
          %s247 = smul.addr %s243, 2
          %s248 = smul.addr %s242, 12
          %s249 = sadd.s32 %s247, %s248
          %s250 = smul.addr %s249, 64
          %s251 = scalar_lea.hbm %s0, %s250
          %s253 = sshll.u32 1, 14
          %s254 = sxor.u32 4294967295, %s253
          %s256 = sld [smem:[#allocation0]]
          %s257 = sadd.s32 2, %s256
          %s259 = sshll.u32 7, 26
          %s260 = sxor.u32 4294967295, %s259
          %s261 = sand.u32 0, %s260
          %s262 = sshll.u32 %s257, 26
          %s263 = sor.u32 %s261, %s262
          %s264 = sshll.u32 %s241, 4
          %s265 = int_to_ptr.vmem [resolvable:$true] %s264
          %271 = sst [smem:[#allocation14]] 768
          %s272 = scalar_lea.smem [#allocation14], 1
          %273 = sst [smem:[%s272]] 256
          %s274 = scalar_lea.smem [#allocation14], 2
          %275 = sst [smem:[%s274]] 2
          %s276 = scalar_lea.smem [#allocation14], 3
          %277 = sst [smem:[%s276]] 128
          %s278 = scalar_lea.smem [#allocation14], 4
          %279 = sst [smem:[%s278]] 128
          %s280 = scalar_lea.smem [#allocation14], 5
          %281 = sst [smem:[%s280]] 8
          %283 = dma.general %s251, 512, %s265, %s238, [#allocation13], [#allocation14], %s263, 0
        $region36: #{_lambda_.1} parent=31 // pred_fallthru
          _
      $region32: #{_lambda_.1} parent=5 // pred_fallthru
        _
      %p284 = scmp.le.s32.totalorder 1, %s17
      %p285 = scmp.lt.s32.totalorder %s17, 4
      %p286 = pnand %p284, %p285
      %p287 = pneg %p286
      // Predicated region
      $region37: #{_lambda_.1} parent=5 // pred_check
        _
      $region38: #{_lambda_.1} parent=5 // pred_check_branch
        %289 = sbr.rel (%p286) target = $region40
      $region39: #{_lambda_.1} parent=5 // pred_region
        %s290 = ssub.s32 %s17, 1
        %s291 = sand.u32 %s44, 1
        %s292 = scalar_lea.sflag [#allocation4], %s291
        %s293 = sand.u32 %s44, 1
        %s294 = smul.addr %s293, 32
        %s295 = scalar_lea.vmem [#allocation3], %s294
        // Predicated region
        $region41: #{_lambda_.1} parent=39 // pred_check
          %p296 = pneg %p57
        $region42: #{_lambda_.1} parent=39 // pred_check_branch
          %298 = sbr.rel (%p296) target = $region44
        $region43: #{_lambda_.1} parent=39 // pred_region
          %299 = dma.done %s292, 512
        $region44: #{_lambda_.1} parent=39 // pred_fallthru
          _
        // Predicated region
        $region45: #{_lambda_.1} parent=39 // pred_check
          %p300 = pneg %p78
        $region46: #{_lambda_.1} parent=39 // pred_check_branch
          %302 = sbr.rel (%p300) target = $region48
        $region47: #{_lambda_.1} parent=39 // pred_region
          %303 = dma.done [#allocation7], 10240
        $region48: #{_lambda_.1} parent=39 // pred_fallthru
          _
        // Predicated region
        $region49: #{_lambda_.1} parent=39 // pred_check
          %p304 = pneg %p99
        $region50: #{_lambda_.1} parent=39 // pred_check_branch
          %306 = sbr.rel (%p304) target = $region52
        $region51: #{_lambda_.1} parent=39 // pred_region
          %307 = dma.done [#allocation7], 128
        $region52: #{_lambda_.1} parent=39 // pred_fallthru
          _
        // Predicated region
        $region53: #{_lambda_.1} parent=39 // pred_check
          %p308 = pneg %p120
        $region54: #{_lambda_.1} parent=39 // pred_check_branch
          %310 = sbr.rel (%p308) target = $region56
        $region55: #{_lambda_.1} parent=39 // pred_region
          %311 = dma.done [#allocation10], 15360
        $region56: #{_lambda_.1} parent=39 // pred_fallthru
          _
        // Predicated region
        $region57: #{_lambda_.1} parent=39 // pred_check
          %p312 = pneg %p141
        $region58: #{_lambda_.1} parent=39 // pred_check_branch
          %314 = sbr.rel (%p312) target = $region60
        $region59: #{_lambda_.1} parent=39 // pred_region
          %315 = dma.done [#allocation10], 16
        $region60: #{_lambda_.1} parent=39 // pred_fallthru
          _
        %s316 = sand.u32 %s44, 1
        %s317 = scalar_lea.sflag [#allocation4], %s316
        %s318 = sand.u32 %s44, 1
        %s319 = smul.addr %s318, 32
        %s320 = scalar_lea.vmem [#allocation3], %s319
        %p321 = pneg %p57
        %p322 = pneg %p54
        %p323 = pneg %p78
        %p324 = pneg %p75
        %p325 = pneg %p99
        %p326 = pneg %p96
        %p327 = pneg %p120
        %p328 = pneg %p117
        %p329 = pneg %p141
        %p330 = pneg %p138
        %p331 = pneg %p167
        %p332 = pneg %p164
        %s333 = smul.u32 2, %s26
        %s334 = smul.u32 2, %s27
        %p336 = scmp.eq.s32.totalorder %s27, 0
        // Predicated region
        $region61: #{_lambda_.1} parent=39 // pred_check
          %p337 = pneg %p336
        $region62: #{_lambda_.1} parent=39 // pred_check_branch
          %339 = sbr.rel (%p337) target = $region64
        $region63: #{_lambda_.1} parent=39 // pred_region
          %340 = vst [vmem:[#allocation2] sm:$0xff] 0.0
          %vm341 = vcmask 1041408
          %vm342 = vcmask 1043458
          %vm343 = vmor %vm342, %vm341
          %vm344 = vcmask 1045508
          %vm345 = vmor %vm344, %vm343
          %vm346 = vcmask 523270
          %vm347 = vmor %vm346, %vm345
          %348 = vst.msk [vmem:[#allocation2 + $0x8] sm:$0xff] %vm347, 0.0
        $region64: #{_lambda_.1} parent=39 // pred_fallthru
          _
        %v349 = vld [vmem:[%s295] sm:$0xff]
        %v350 = vld [vmem:[%s295 + $0x8] sm:$0xff]
        %v351 = vld [vmem:[%s295 + $0x10] sm:$0xff]
        %v352 = vld [vmem:[%s295 + $0x18] sm:$0xff]
        %v353 = vld [vmem:[#allocation6] sm:$0xff]
        %v354 = vld [vmem:[#allocation6 + $0x8] sm:$0xff]
        %v355 = vld [vmem:[#allocation6 + $0x10] sm:$0xff]
        %v356 = vld [vmem:[#allocation6 + $0x18] sm:$0xff]
        %v357 = vld [vmem:[#allocation6 + $0x20] sm:$0xff]
        %v358 = vld [vmem:[#allocation6 + $0x28] sm:$0xff]
        %v359 = vld [vmem:[#allocation6 + $0x30] sm:$0xff]
        %v360 = vld [vmem:[#allocation6 + $0x38] sm:$0xff]
        %v361 = vld [vmem:[#allocation6 + $0x40] sm:$0xff]
        %v362 = vld [vmem:[#allocation6 + $0x48] sm:$0xff]
        %v363 = vld [vmem:[#allocation6 + $0x50] sm:$0xff]
        %v364 = vld [vmem:[#allocation6 + $0x58] sm:$0xff]
        %v365 = vld [vmem:[#allocation6 + $0x60] sm:$0xff]
        %v366 = vld [vmem:[#allocation6 + $0x68] sm:$0xff]
        %v367 = vld [vmem:[#allocation6 + $0x70] sm:$0xff]
        %v368 = vld [vmem:[#allocation6 + $0x78] sm:$0xff]
        %v369 = vld [vmem:[#allocation6 + $0x80] sm:$0xff]
        %v370 = vld [vmem:[#allocation6 + $0x88] sm:$0xff]
        %v371 = vld [vmem:[#allocation6 + $0x90] sm:$0xff]
        %v372 = vld [vmem:[#allocation6 + $0x98] sm:$0xff]
        %v373 = vld [vmem:[#allocation6 + $0xa0] sm:$0xff]
        %v374 = vld [vmem:[#allocation6 + $0xa8] sm:$0xff]
        %v375 = vld [vmem:[#allocation6 + $0xb0] sm:$0xff]
        %v376 = vld [vmem:[#allocation6 + $0xb8] sm:$0xff]
        %v377 = vld [vmem:[#allocation6 + $0xc0] sm:$0xff]
        %v378 = vld [vmem:[#allocation6 + $0xc8] sm:$0xff]
        %v379 = vld [vmem:[#allocation6 + $0xd0] sm:$0xff]
        %v380 = vld [vmem:[#allocation6 + $0xd8] sm:$0xff]
        %v381 = vld [vmem:[#allocation6 + $0xe0] sm:$0xff]
        %v382 = vld [vmem:[#allocation6 + $0xe8] sm:$0xff]
        %v383 = vld [vmem:[#allocation6 + $0xf0] sm:$0xff]
        %v384 = vld [vmem:[#allocation6 + $0xf8] sm:$0xff]
        %v385 = vld [vmem:[#allocation6 + $0x100] sm:$0xff]
        %v386 = vld [vmem:[#allocation6 + $0x108] sm:$0xff]
        %v387 = vld [vmem:[#allocation6 + $0x110] sm:$0xff]
        %v388 = vld [vmem:[#allocation6 + $0x118] sm:$0xff]
        %v389 = vld [vmem:[#allocation6 + $0x120] sm:$0xff]
        %v390 = vld [vmem:[#allocation6 + $0x128] sm:$0xff]
        %v391 = vld [vmem:[#allocation6 + $0x130] sm:$0xff]
        %v392 = vld [vmem:[#allocation6 + $0x138] sm:$0xff]
        %v393 = vld [vmem:[#allocation6 + $0x140] sm:$0xff]
        %v394 = vld [vmem:[#allocation6 + $0x148] sm:$0xff]
        %v395 = vld [vmem:[#allocation6 + $0x150] sm:$0xff]
        %v396 = vld [vmem:[#allocation6 + $0x158] sm:$0xff]
        %v397 = vld [vmem:[#allocation6 + $0x160] sm:$0xff]
        %v398 = vld [vmem:[#allocation6 + $0x168] sm:$0xff]
        %v399 = vld [vmem:[#allocation6 + $0x170] sm:$0xff]
        %v400 = vld [vmem:[#allocation6 + $0x178] sm:$0xff]
        %v401 = vld [vmem:[#allocation6 + $0x180] sm:$0xff]
        %v402 = vld [vmem:[#allocation6 + $0x188] sm:$0xff]
        %v403 = vld [vmem:[#allocation6 + $0x190] sm:$0xff]
        %v404 = vld [vmem:[#allocation6 + $0x198] sm:$0xff]
        %v405 = vld [vmem:[#allocation6 + $0x1a0] sm:$0xff]
        %v406 = vld [vmem:[#allocation6 + $0x1a8] sm:$0xff]
        %v407 = vld [vmem:[#allocation6 + $0x1b0] sm:$0xff]
        %v408 = vld [vmem:[#allocation6 + $0x1b8] sm:$0xff]
        %v409 = vld [vmem:[#allocation6 + $0x1c0] sm:$0xff]
        %v410 = vld [vmem:[#allocation6 + $0x1c8] sm:$0xff]
        %v411 = vld [vmem:[#allocation6 + $0x1d0] sm:$0xff]
        %v412 = vld [vmem:[#allocation6 + $0x1d8] sm:$0xff]
        %v413 = vld [vmem:[#allocation6 + $0x1e0] sm:$0xff]
        %v414 = vld [vmem:[#allocation6 + $0x1e8] sm:$0xff]
        %v415 = vld [vmem:[#allocation6 + $0x1f0] sm:$0xff]
        %v416 = vld [vmem:[#allocation6 + $0x1f8] sm:$0xff]
        %v417 = vld [vmem:[#allocation6 + $0x200] sm:$0xff]
        %v418 = vld [vmem:[#allocation6 + $0x208] sm:$0xff]
        %v419 = vld [vmem:[#allocation6 + $0x210] sm:$0xff]
        %v420 = vld [vmem:[#allocation6 + $0x218] sm:$0xff]
        %v421 = vld [vmem:[#allocation6 + $0x220] sm:$0xff]
        %v422 = vld [vmem:[#allocation6 + $0x228] sm:$0xff]
        %v423 = vld [vmem:[#allocation6 + $0x230] sm:$0xff]
        %v424 = vld [vmem:[#allocation6 + $0x238] sm:$0xff]
        %v425 = vld [vmem:[#allocation6 + $0x240] sm:$0xff]
        %v426 = vld [vmem:[#allocation6 + $0x248] sm:$0xff]
        %v427 = vld [vmem:[#allocation6 + $0x250] sm:$0xff]
        %v428 = vld [vmem:[#allocation6 + $0x258] sm:$0xff]
        %v429 = vld [vmem:[#allocation6 + $0x260] sm:$0xff]
        %v430 = vld [vmem:[#allocation6 + $0x268] sm:$0xff]
        %v431 = vld [vmem:[#allocation6 + $0x270] sm:$0xff]
        %v432 = vld [vmem:[#allocation6 + $0x278] sm:$0xff]
        %v433 = vld [vmem:[#allocation8] sm:$0xff]
        %v435 = vlaneseq
        %v436 = vshrl.u32 %v435, 7
        %v437 = vsub.s32 0, %v436
        %v438 = vrot.slane %v433, %v437
        %v439 = vlaneseq
        %v440 = vshrl.u32 %v439, 7
        %v441 = vsub.s32 1, %v440
        %v442 = vrot.slane %v433, %v441
        %v443 = vlaneseq
        %v444 = vshrl.u32 %v443, 7
        %v445 = vsub.s32 2, %v444
        %v446 = vrot.slane %v433, %v445
        %v447 = vlaneseq
        %v448 = vshrl.u32 %v447, 7
        %v449 = vsub.s32 3, %v448
        %v450 = vrot.slane %v433, %v449
        %v451 = vlaneseq
        %v452 = vshrl.u32 %v451, 7
        %v453 = vsub.s32 4, %v452
        %v454 = vrot.slane %v433, %v453
        %v455 = vlaneseq
        %v456 = vshrl.u32 %v455, 7
        %v457 = vsub.s32 5, %v456
        %v458 = vrot.slane %v433, %v457
        %v459 = vlaneseq
        %v460 = vshrl.u32 %v459, 7
        %v461 = vsub.s32 6, %v460
        %v462 = vrot.slane %v433, %v461
        %v463 = vlaneseq
        %v464 = vshrl.u32 %v463, 7
        %v465 = vsub.s32 7, %v464
        %v466 = vrot.slane %v433, %v465
        %v479 = vunpack.c.l.b16 %v349
        %v480 = vunpack.c.h.b16 %v349
        %v481 = vunpack.c.l.b16 %v350
        %v482 = vunpack.c.h.b16 %v350
        %v483 = vunpack.c.l.b16 %v351
        %v484 = vunpack.c.h.b16 %v351
        %v485 = vunpack.c.l.b16 %v352
        %v486 = vunpack.c.h.b16 %v352
        %v487 = vpack.c.b16 %v481, %v479
        %v488 = vpack.c.b16 %v482, %v480
        %v489 = vpack.c.b16 %v485, %v483
        %v490 = vpack.c.b16 %v486, %v484
        %v573 = vunpack.c.l.b16 %v353
        %v574 = vunpack.c.h.b16 %v353
        %v575 = vunpack.c.l.b16 %v354
        %v576 = vunpack.c.h.b16 %v354
        %v577 = vunpack.c.l.b16 %v355
        %v578 = vunpack.c.h.b16 %v355
        %v579 = vunpack.c.l.b16 %v356
        %v580 = vunpack.c.h.b16 %v356
        %v581 = vunpack.c.l.b16 %v357
        %v582 = vunpack.c.h.b16 %v357
        %v583 = vunpack.c.l.b16 %v358
        %v584 = vunpack.c.h.b16 %v358
        %v585 = vunpack.c.l.b16 %v359
        %v586 = vunpack.c.h.b16 %v359
        %v587 = vunpack.c.l.b16 %v360
        %v588 = vunpack.c.h.b16 %v360
        %v589 = vunpack.c.l.b16 %v361
        %v590 = vunpack.c.h.b16 %v361
        %v591 = vunpack.c.l.b16 %v362
        %v592 = vunpack.c.h.b16 %v362
        %v593 = vunpack.c.l.b16 %v363
        %v594 = vunpack.c.h.b16 %v363
        %v595 = vunpack.c.l.b16 %v364
        %v596 = vunpack.c.h.b16 %v364
        %v597 = vunpack.c.l.b16 %v365
        %v598 = vunpack.c.h.b16 %v365
        %v599 = vunpack.c.l.b16 %v366
        %v600 = vunpack.c.h.b16 %v366
        %v601 = vunpack.c.l.b16 %v367
        %v602 = vunpack.c.h.b16 %v367
        %v603 = vunpack.c.l.b16 %v368
        %v604 = vunpack.c.h.b16 %v368
        %v605 = vunpack.c.l.b16 %v369
        %v606 = vunpack.c.h.b16 %v369
        %v607 = vunpack.c.l.b16 %v370
        %v608 = vunpack.c.h.b16 %v370
        %v609 = vunpack.c.l.b16 %v371
        %v610 = vunpack.c.h.b16 %v371
        %v611 = vunpack.c.l.b16 %v372
        %v612 = vunpack.c.h.b16 %v372
        %v613 = vunpack.c.l.b16 %v373
        %v614 = vunpack.c.h.b16 %v373
        %v615 = vunpack.c.l.b16 %v374
        %v616 = vunpack.c.h.b16 %v374
        %v617 = vunpack.c.l.b16 %v375
        %v618 = vunpack.c.h.b16 %v375
        %v619 = vunpack.c.l.b16 %v376
        %v620 = vunpack.c.h.b16 %v376
        %v621 = vunpack.c.l.b16 %v377
        %v622 = vunpack.c.h.b16 %v377
        %v623 = vunpack.c.l.b16 %v378
        %v624 = vunpack.c.h.b16 %v378
        %v625 = vunpack.c.l.b16 %v379
        %v626 = vunpack.c.h.b16 %v379
        %v627 = vunpack.c.l.b16 %v380
        %v628 = vunpack.c.h.b16 %v380
        %v629 = vunpack.c.l.b16 %v381
        %v630 = vunpack.c.h.b16 %v381
        %v631 = vunpack.c.l.b16 %v382
        %v632 = vunpack.c.h.b16 %v382
        %v633 = vunpack.c.l.b16 %v383
        %v634 = vunpack.c.h.b16 %v383
        %v635 = vunpack.c.l.b16 %v384
        %v636 = vunpack.c.h.b16 %v384
        %v637 = vunpack.c.l.b16 %v385
        %v638 = vunpack.c.h.b16 %v385
        %v639 = vunpack.c.l.b16 %v386
        %v640 = vunpack.c.h.b16 %v386
        %v641 = vunpack.c.l.b16 %v387
        %v642 = vunpack.c.h.b16 %v387
        %v643 = vunpack.c.l.b16 %v388
        %v644 = vunpack.c.h.b16 %v388
        %v645 = vunpack.c.l.b16 %v389
        %v646 = vunpack.c.h.b16 %v389
        %v647 = vunpack.c.l.b16 %v390
        %v648 = vunpack.c.h.b16 %v390
        %v649 = vunpack.c.l.b16 %v391
        %v650 = vunpack.c.h.b16 %v391
        %v651 = vunpack.c.l.b16 %v392
        %v652 = vunpack.c.h.b16 %v392
        %v653 = vunpack.c.l.b16 %v393
        %v654 = vunpack.c.h.b16 %v393
        %v655 = vunpack.c.l.b16 %v394
        %v656 = vunpack.c.h.b16 %v394
        %v657 = vunpack.c.l.b16 %v395
        %v658 = vunpack.c.h.b16 %v395
        %v659 = vunpack.c.l.b16 %v396
        %v660 = vunpack.c.h.b16 %v396
        %v661 = vunpack.c.l.b16 %v397
        %v662 = vunpack.c.h.b16 %v397
        %v663 = vunpack.c.l.b16 %v398
        %v664 = vunpack.c.h.b16 %v398
        %v665 = vunpack.c.l.b16 %v399
        %v666 = vunpack.c.h.b16 %v399
        %v667 = vunpack.c.l.b16 %v400
        %v668 = vunpack.c.h.b16 %v400
        %v669 = vunpack.c.l.b16 %v401
        %v670 = vunpack.c.h.b16 %v401
        %v671 = vunpack.c.l.b16 %v402
        %v672 = vunpack.c.h.b16 %v402
        %v673 = vunpack.c.l.b16 %v403
        %v674 = vunpack.c.h.b16 %v403
        %v675 = vunpack.c.l.b16 %v404
        %v676 = vunpack.c.h.b16 %v404
        %v677 = vunpack.c.l.b16 %v405
        %v678 = vunpack.c.h.b16 %v405
        %v679 = vunpack.c.l.b16 %v406
        %v680 = vunpack.c.h.b16 %v406
        %v681 = vunpack.c.l.b16 %v407
        %v682 = vunpack.c.h.b16 %v407
        %v683 = vunpack.c.l.b16 %v408
        %v684 = vunpack.c.h.b16 %v408
        %v685 = vunpack.c.l.b16 %v409
        %v686 = vunpack.c.h.b16 %v409
        %v687 = vunpack.c.l.b16 %v410
        %v688 = vunpack.c.h.b16 %v410
        %v689 = vunpack.c.l.b16 %v411
        %v690 = vunpack.c.h.b16 %v411
        %v691 = vunpack.c.l.b16 %v412
        %v692 = vunpack.c.h.b16 %v412
        %v693 = vunpack.c.l.b16 %v413
        %v694 = vunpack.c.h.b16 %v413
        %v695 = vunpack.c.l.b16 %v414
        %v696 = vunpack.c.h.b16 %v414
        %v697 = vunpack.c.l.b16 %v415
        %v698 = vunpack.c.h.b16 %v415
        %v699 = vunpack.c.l.b16 %v416
        %v700 = vunpack.c.h.b16 %v416
        %v701 = vunpack.c.l.b16 %v417
        %v702 = vunpack.c.h.b16 %v417
        %v703 = vunpack.c.l.b16 %v418
        %v704 = vunpack.c.h.b16 %v418
        %v705 = vunpack.c.l.b16 %v419
        %v706 = vunpack.c.h.b16 %v419
        %v707 = vunpack.c.l.b16 %v420
        %v708 = vunpack.c.h.b16 %v420
        %v709 = vunpack.c.l.b16 %v421
        %v710 = vunpack.c.h.b16 %v421
        %v711 = vunpack.c.l.b16 %v422
        %v712 = vunpack.c.h.b16 %v422
        %v713 = vunpack.c.l.b16 %v423
        %v714 = vunpack.c.h.b16 %v423
        %v715 = vunpack.c.l.b16 %v424
        %v716 = vunpack.c.h.b16 %v424
        %v717 = vunpack.c.l.b16 %v425
        %v718 = vunpack.c.h.b16 %v425
        %v719 = vunpack.c.l.b16 %v426
        %v720 = vunpack.c.h.b16 %v426
        %v721 = vunpack.c.l.b16 %v427
        %v722 = vunpack.c.h.b16 %v427
        %v723 = vunpack.c.l.b16 %v428
        %v724 = vunpack.c.h.b16 %v428
        %v725 = vunpack.c.l.b16 %v429
        %v726 = vunpack.c.h.b16 %v429
        %v727 = vunpack.c.l.b16 %v430
        %v728 = vunpack.c.h.b16 %v430
        %v729 = vunpack.c.l.b16 %v431
        %v730 = vunpack.c.h.b16 %v431
        %v731 = vunpack.c.l.b16 %v432
        %v732 = vunpack.c.h.b16 %v432
        %v733 = vpack.c.b16 %v581, %v573
        %v734 = vpack.c.b16 %v582, %v574
        %v735 = vpack.c.b16 %v583, %v575
        %v736 = vpack.c.b16 %v584, %v576
        %v737 = vpack.c.b16 %v585, %v577
        %v738 = vpack.c.b16 %v586, %v578
        %v739 = vpack.c.b16 %v587, %v579
        %v740 = vpack.c.b16 %v588, %v580
        %v741 = vpack.c.b16 %v597, %v589
        %v742 = vpack.c.b16 %v598, %v590
        %v743 = vpack.c.b16 %v599, %v591
        %v744 = vpack.c.b16 %v600, %v592
        %v745 = vpack.c.b16 %v601, %v593
        %v746 = vpack.c.b16 %v602, %v594
        %v747 = vpack.c.b16 %v603, %v595
        %v748 = vpack.c.b16 %v604, %v596
        %v749 = vpack.c.b16 %v613, %v605
        %v750 = vpack.c.b16 %v614, %v606
        %v751 = vpack.c.b16 %v615, %v607
        %v752 = vpack.c.b16 %v616, %v608
        %v753 = vpack.c.b16 %v617, %v609
        %v754 = vpack.c.b16 %v618, %v610
        %v755 = vpack.c.b16 %v619, %v611
        %v756 = vpack.c.b16 %v620, %v612
        %v757 = vpack.c.b16 %v629, %v621
        %v758 = vpack.c.b16 %v630, %v622
        %v759 = vpack.c.b16 %v631, %v623
        %v760 = vpack.c.b16 %v632, %v624
        %v761 = vpack.c.b16 %v633, %v625
        %v762 = vpack.c.b16 %v634, %v626
        %v763 = vpack.c.b16 %v635, %v627
        %v764 = vpack.c.b16 %v636, %v628
        %v765 = vpack.c.b16 %v645, %v637
        %v766 = vpack.c.b16 %v646, %v638
        %v767 = vpack.c.b16 %v647, %v639
        %v768 = vpack.c.b16 %v648, %v640
        %v769 = vpack.c.b16 %v649, %v641
        %v770 = vpack.c.b16 %v650, %v642
        %v771 = vpack.c.b16 %v651, %v643
        %v772 = vpack.c.b16 %v652, %v644
        %v773 = vpack.c.b16 %v661, %v653
        %v774 = vpack.c.b16 %v662, %v654
        %v775 = vpack.c.b16 %v663, %v655
        %v776 = vpack.c.b16 %v664, %v656
        %v777 = vpack.c.b16 %v665, %v657
        %v778 = vpack.c.b16 %v666, %v658
        %v779 = vpack.c.b16 %v667, %v659
        %v780 = vpack.c.b16 %v668, %v660
        %v781 = vpack.c.b16 %v677, %v669
        %v782 = vpack.c.b16 %v678, %v670
        %v783 = vpack.c.b16 %v679, %v671
        %v784 = vpack.c.b16 %v680, %v672
        %v785 = vpack.c.b16 %v681, %v673
        %v786 = vpack.c.b16 %v682, %v674
        %v787 = vpack.c.b16 %v683, %v675
        %v788 = vpack.c.b16 %v684, %v676
        %v789 = vpack.c.b16 %v693, %v685
        %v790 = vpack.c.b16 %v694, %v686
        %v791 = vpack.c.b16 %v695, %v687
        %v792 = vpack.c.b16 %v696, %v688
        %v793 = vpack.c.b16 %v697, %v689
        %v794 = vpack.c.b16 %v698, %v690
        %v795 = vpack.c.b16 %v699, %v691
        %v796 = vpack.c.b16 %v700, %v692
        %v797 = vpack.c.b16 %v709, %v701
        %v798 = vpack.c.b16 %v710, %v702
        %v799 = vpack.c.b16 %v711, %v703
        %v800 = vpack.c.b16 %v712, %v704
        %v801 = vpack.c.b16 %v713, %v705
        %v802 = vpack.c.b16 %v714, %v706
        %v803 = vpack.c.b16 %v715, %v707
        %v804 = vpack.c.b16 %v716, %v708
        %v805 = vpack.c.b16 %v725, %v717
        %v806 = vpack.c.b16 %v726, %v718
        %v807 = vpack.c.b16 %v727, %v719
        %v808 = vpack.c.b16 %v728, %v720
        %v809 = vpack.c.b16 %v729, %v721
        %v810 = vpack.c.b16 %v730, %v722
        %v811 = vpack.c.b16 %v731, %v723
        %v812 = vpack.c.b16 %v732, %v724
        %vm893 = vcmask 261120
        %v895 = vsel %vm893, %v488, 0
        %v898 = vsel %vm893, %v490, 0
        %900 = vmatprep.subr.bf16.mxu0 %v734
        %901 = vmatpush1.bf16.msra.mxu0 %v733
        %902 = vmatprep.subr.bf16.mxu0 %v742
        %903 = vmatpush1.bf16.msra.mxu0 %v741
        %904 = vmatprep.subr.bf16.mxu0 %v750
        %905 = vmatpush1.bf16.msra.mxu0 %v749
        %906 = vmatprep.subr.bf16.mxu0 %v758
        %907 = vmatpush1.bf16.msra.mxu0 %v757
        %908 = vmatprep.subr.bf16.mxu0 %v766
        %909 = vmatpush1.bf16.msra.mxu0 %v765
        %910 = vmatprep.subr.bf16.mxu0 %v774
        %911 = vmatpush1.bf16.msra.mxu0 %v773
        %912 = vmatprep.subr.bf16.mxu0 %v782
        %913 = vmatpush1.bf16.msra.mxu0 %v781
        %914 = vmatprep.subr.bf16.mxu0 %v790
        %915 = vmatpush1.bf16.msra.mxu0 %v789
        %916 = vmatprep.subr.bf16.mxu0 %v798
        %917 = vmatpush1.bf16.msra.mxu0 %v797
        %918 = vmatprep.subr.bf16.mxu0 %v806
        %919 = vmatpush1.bf16.msra.mxu0 %v805
        %920 = vmatprep.subr.bf16.mxu0 0
        %921 = vmatpush1.bf16.msra.mxu0 0
        %922 = vmatprep.subr.bf16.mxu0 0
        %923 = vmatpush1.bf16.msra.mxu0 0
        %924 = vmatprep.subr.bf16.mxu0 0
        %925 = vmatpush1.bf16.msra.mxu0 0
        %926 = vmatprep.subr.bf16.mxu0 0
        %927 = vmatpush1.bf16.msra.mxu0 0
        %928 = vmatprep.subr.bf16.mxu0 0
        %929 = vmatpush1.bf16.msra.mxu0 0
        %930 = vmatprep.subr.bf16.mxu0 0
        %931 = vmatpush1.bf16.msra.mxu0 0
        %932 = vmatprep.mubr.bf16.mxu0 %v895
        %933 = vmatmul.mubr.bf16.gmra.mrb[0].mxu0 %v487
        %v934 = vpop.f32.mrb[0].mxu0
        %v935 = vadd.f32 %v438, %v934
        %v936 = vpop.f32.mrb[0].mxu0
        %v937 = vadd.f32 %v442, %v936
        %v938 = vpop.f32.mrb[0].mxu0
        %v939 = vadd.f32 %v438, %v938
        %v940 = vpop.f32.mrb[0].mxu0
        %v941 = vadd.f32 %v442, %v940
        %942 = vmatprep.mubr.bf16.mxu0 %v898
        %943 = vmatmul.mubr.bf16.gmra.mrb[0].mxu0 %v489
        %v944 = vpop.f32.mrb[0].mxu0
        %v945 = vadd.f32 %v438, %v944
        %v946 = vpop.f32.mrb[0].mxu0
        %v947 = vadd.f32 %v442, %v946
        %v948 = vpop.f32.mrb[0].mxu0
        %v949 = vadd.f32 %v438, %v948
        %v950 = vpop.f32.mrb[0].mxu0
        %v951 = vadd.f32 %v442, %v950
        %952 = vdwg.mxu0
        %953 = vmatprep.subr.bf16.mxu0 %v736
        %954 = vmatpush1.bf16.msra.mxu0 %v735
        %955 = vmatprep.subr.bf16.mxu0 %v744
        %956 = vmatpush1.bf16.msra.mxu0 %v743
        %957 = vmatprep.subr.bf16.mxu0 %v752
        %958 = vmatpush1.bf16.msra.mxu0 %v751
        %959 = vmatprep.subr.bf16.mxu0 %v760
        %960 = vmatpush1.bf16.msra.mxu0 %v759
        %961 = vmatprep.subr.bf16.mxu0 %v768
        %962 = vmatpush1.bf16.msra.mxu0 %v767
        %963 = vmatprep.subr.bf16.mxu0 %v776
        %964 = vmatpush1.bf16.msra.mxu0 %v775
        %965 = vmatprep.subr.bf16.mxu0 %v784
        %966 = vmatpush1.bf16.msra.mxu0 %v783
        %967 = vmatprep.subr.bf16.mxu0 %v792
        %968 = vmatpush1.bf16.msra.mxu0 %v791
        %969 = vmatprep.subr.bf16.mxu0 %v800
        %970 = vmatpush1.bf16.msra.mxu0 %v799
        %971 = vmatprep.subr.bf16.mxu0 %v808
        %972 = vmatpush1.bf16.msra.mxu0 %v807
        %973 = vmatprep.subr.bf16.mxu0 0
        %974 = vmatpush1.bf16.msra.mxu0 0
        %975 = vmatprep.subr.bf16.mxu0 0
        %976 = vmatpush1.bf16.msra.mxu0 0
        %977 = vmatprep.subr.bf16.mxu0 0
        %978 = vmatpush1.bf16.msra.mxu0 0
        %979 = vmatprep.subr.bf16.mxu0 0
        %980 = vmatpush1.bf16.msra.mxu0 0
        %981 = vmatprep.subr.bf16.mxu0 0
        %982 = vmatpush1.bf16.msra.mxu0 0
        %983 = vmatprep.subr.bf16.mxu0 0
        %984 = vmatpush1.bf16.msra.mxu0 0
        %985 = vmatprep.mubr.bf16.mxu0 %v895
        %986 = vmatmul.mubr.bf16.gmra.mrb[0].mxu0 %v487
        %v987 = vpop.f32.mrb[0].mxu0
        %v988 = vadd.f32 %v446, %v987
        %v989 = vpop.f32.mrb[0].mxu0
        %v990 = vadd.f32 %v450, %v989
        %v991 = vpop.f32.mrb[0].mxu0
        %v992 = vadd.f32 %v446, %v991
        %v993 = vpop.f32.mrb[0].mxu0
        %v994 = vadd.f32 %v450, %v993
        %995 = vmatprep.mubr.bf16.mxu0 %v898
        %996 = vmatmul.mubr.bf16.gmra.mrb[0].mxu0 %v489
        %v997 = vpop.f32.mrb[0].mxu0
        %v998 = vadd.f32 %v446, %v997
        %v999 = vpop.f32.mrb[0].mxu0
        %v1000 = vadd.f32 %v450, %v999
        %v1001 = vpop.f32.mrb[0].mxu0
        %v1002 = vadd.f32 %v446, %v1001
        %v1003 = vpop.f32.mrb[0].mxu0
        %v1004 = vadd.f32 %v450, %v1003
        %1005 = vdwg.mxu0
        %1006 = vmatprep.subr.bf16.mxu0 %v738
        %1007 = vmatpush1.bf16.msra.mxu0 %v737
        %1008 = vmatprep.subr.bf16.mxu0 %v746
        %1009 = vmatpush1.bf16.msra.mxu0 %v745
        %1010 = vmatprep.subr.bf16.mxu0 %v754
        %1011 = vmatpush1.bf16.msra.mxu0 %v753
        %1012 = vmatprep.subr.bf16.mxu0 %v762
        %1013 = vmatpush1.bf16.msra.mxu0 %v761
        %1014 = vmatprep.subr.bf16.mxu0 %v770
        %1015 = vmatpush1.bf16.msra.mxu0 %v769
        %1016 = vmatprep.subr.bf16.mxu0 %v778
        %1017 = vmatpush1.bf16.msra.mxu0 %v777
        %1018 = vmatprep.subr.bf16.mxu0 %v786
        %1019 = vmatpush1.bf16.msra.mxu0 %v785
        %1020 = vmatprep.subr.bf16.mxu0 %v794
        %1021 = vmatpush1.bf16.msra.mxu0 %v793
        %1022 = vmatprep.subr.bf16.mxu0 %v802
        %1023 = vmatpush1.bf16.msra.mxu0 %v801
        %1024 = vmatprep.subr.bf16.mxu0 %v810
        %1025 = vmatpush1.bf16.msra.mxu0 %v809
        %1026 = vmatprep.subr.bf16.mxu0 0
        %1027 = vmatpush1.bf16.msra.mxu0 0
        %1028 = vmatprep.subr.bf16.mxu0 0
        %1029 = vmatpush1.bf16.msra.mxu0 0
        %1030 = vmatprep.subr.bf16.mxu0 0
        %1031 = vmatpush1.bf16.msra.mxu0 0
        %1032 = vmatprep.subr.bf16.mxu0 0
        %1033 = vmatpush1.bf16.msra.mxu0 0
        %1034 = vmatprep.subr.bf16.mxu0 0
        %1035 = vmatpush1.bf16.msra.mxu0 0
        %1036 = vmatprep.subr.bf16.mxu0 0
        %1037 = vmatpush1.bf16.msra.mxu0 0
        %1038 = vmatprep.mubr.bf16.mxu0 %v895
        %1039 = vmatmul.mubr.bf16.gmra.mrb[0].mxu0 %v487
        %v1040 = vpop.f32.mrb[0].mxu0
        %v1041 = vadd.f32 %v454, %v1040
        %v1042 = vpop.f32.mrb[0].mxu0
        %v1043 = vadd.f32 %v458, %v1042
        %v1044 = vpop.f32.mrb[0].mxu0
        %v1045 = vadd.f32 %v454, %v1044
        %v1046 = vpop.f32.mrb[0].mxu0
        %v1047 = vadd.f32 %v458, %v1046
        %1048 = vmatprep.mubr.bf16.mxu0 %v898
        %1049 = vmatmul.mubr.bf16.gmra.mrb[0].mxu0 %v489
        %v1050 = vpop.f32.mrb[0].mxu0
        %v1051 = vadd.f32 %v454, %v1050
        %v1052 = vpop.f32.mrb[0].mxu0
        %v1053 = vadd.f32 %v458, %v1052
        %v1054 = vpop.f32.mrb[0].mxu0
        %v1055 = vadd.f32 %v454, %v1054
        %v1056 = vpop.f32.mrb[0].mxu0
        %v1057 = vadd.f32 %v458, %v1056
        %1058 = vdwg.mxu0
        %1059 = vmatprep.subr.bf16.mxu0 %v740
        %1060 = vmatpush1.bf16.msra.mxu0 %v739
        %1061 = vmatprep.subr.bf16.mxu0 %v748
        %1062 = vmatpush1.bf16.msra.mxu0 %v747
        %1063 = vmatprep.subr.bf16.mxu0 %v756
        %1064 = vmatpush1.bf16.msra.mxu0 %v755
        %1065 = vmatprep.subr.bf16.mxu0 %v764
        %1066 = vmatpush1.bf16.msra.mxu0 %v763
        %1067 = vmatprep.subr.bf16.mxu0 %v772
        %1068 = vmatpush1.bf16.msra.mxu0 %v771
        %1069 = vmatprep.subr.bf16.mxu0 %v780
        %1070 = vmatpush1.bf16.msra.mxu0 %v779
        %1071 = vmatprep.subr.bf16.mxu0 %v788
        %1072 = vmatpush1.bf16.msra.mxu0 %v787
        %1073 = vmatprep.subr.bf16.mxu0 %v796
        %1074 = vmatpush1.bf16.msra.mxu0 %v795
        %1075 = vmatprep.subr.bf16.mxu0 %v804
        %1076 = vmatpush1.bf16.msra.mxu0 %v803
        %1077 = vmatprep.subr.bf16.mxu0 %v812
        %1078 = vmatpush1.bf16.msra.mxu0 %v811
        %1079 = vmatprep.subr.bf16.mxu0 0
        %1080 = vmatpush1.bf16.msra.mxu0 0
        %1081 = vmatprep.subr.bf16.mxu0 0
        %1082 = vmatpush1.bf16.msra.mxu0 0
        %1083 = vmatprep.subr.bf16.mxu0 0
        %1084 = vmatpush1.bf16.msra.mxu0 0
        %1085 = vmatprep.subr.bf16.mxu0 0
        %1086 = vmatpush1.bf16.msra.mxu0 0
        %1087 = vmatprep.subr.bf16.mxu0 0
        %1088 = vmatpush1.bf16.msra.mxu0 0
        %1089 = vmatprep.subr.bf16.mxu0 0
        %1090 = vmatpush1.bf16.msra.mxu0 0
        %1091 = vmatprep.mubr.bf16.mxu0 %v895
        %1092 = vmatmul.mubr.bf16.gmra.mrb[0].mxu0 %v487
        %v1093 = vpop.f32.mrb[0].mxu0
        %v1094 = vadd.f32 %v462, %v1093
        %v1095 = vpop.f32.mrb[0].mxu0
        %v1096 = vadd.f32 %v466, %v1095
        %v1097 = vpop.f32.mrb[0].mxu0
        %v1098 = vadd.f32 %v462, %v1097
        %v1099 = vpop.f32.mrb[0].mxu0
        %v1100 = vadd.f32 %v466, %v1099
        %1101 = vmatprep.mubr.bf16.mxu0 %v898
        %1102 = vmatmul.mubr.bf16.gmra.mrb[0].mxu0 %v489
        %v1103 = vpop.f32.mrb[0].mxu0
        %v1104 = vadd.f32 %v462, %v1103
        %v1105 = vpop.f32.mrb[0].mxu0
        %v1106 = vadd.f32 %v466, %v1105
        %v1107 = vpop.f32.mrb[0].mxu0
        %v1108 = vadd.f32 %v462, %v1107
        %v1109 = vpop.f32.mrb[0].mxu0
        %v1110 = vadd.f32 %v466, %v1109
        %1111 = vdwg.mxu0
        %v1112 = vadd.f32 %v935, 3.0
        %v1113 = vadd.f32 %v937, 3.0
        %v1114 = vadd.f32 %v988, 3.0
        %v1115 = vadd.f32 %v990, 3.0
        %v1116 = vadd.f32 %v1041, 3.0
        %v1117 = vadd.f32 %v1043, 3.0
        %v1118 = vadd.f32 %v1094, 3.0
        %v1119 = vadd.f32 %v1096, 3.0
        %v1120 = vadd.f32 %v939, 3.0
        %v1121 = vadd.f32 %v941, 3.0
        %v1122 = vadd.f32 %v992, 3.0
        %v1123 = vadd.f32 %v994, 3.0
        %v1124 = vadd.f32 %v1045, 3.0
        %v1125 = vadd.f32 %v1047, 3.0
        %v1126 = vadd.f32 %v1098, 3.0
        %v1127 = vadd.f32 %v1100, 3.0
        %v1128 = vadd.f32 %v945, 3.0
        %v1129 = vadd.f32 %v947, 3.0
        %v1130 = vadd.f32 %v998, 3.0
        %v1131 = vadd.f32 %v1000, 3.0
        %v1132 = vadd.f32 %v1051, 3.0
        %v1133 = vadd.f32 %v1053, 3.0
        %v1134 = vadd.f32 %v1104, 3.0
        %v1135 = vadd.f32 %v1106, 3.0
        %v1136 = vadd.f32 %v949, 3.0
        %v1137 = vadd.f32 %v951, 3.0
        %v1138 = vadd.f32 %v1002, 3.0
        %v1139 = vadd.f32 %v1004, 3.0
        %v1140 = vadd.f32 %v1055, 3.0
        %v1141 = vadd.f32 %v1057, 3.0
        %v1142 = vadd.f32 %v1108, 3.0
        %v1143 = vadd.f32 %v1110, 3.0
        %v1144 = vmax.f32 %v1112, 0.0
        %v1145 = vmax.f32 %v1113, 0.0
        %v1146 = vmax.f32 %v1114, 0.0
        %v1147 = vmax.f32 %v1115, 0.0
        %v1148 = vmax.f32 %v1116, 0.0
        %v1149 = vmax.f32 %v1117, 0.0
        %v1150 = vmax.f32 %v1118, 0.0
        %v1151 = vmax.f32 %v1119, 0.0
        %v1152 = vmax.f32 %v1120, 0.0
        %v1153 = vmax.f32 %v1121, 0.0
        %v1154 = vmax.f32 %v1122, 0.0
        %v1155 = vmax.f32 %v1123, 0.0
        %v1156 = vmax.f32 %v1124, 0.0
        %v1157 = vmax.f32 %v1125, 0.0
        %v1158 = vmax.f32 %v1126, 0.0
        %v1159 = vmax.f32 %v1127, 0.0
        %v1160 = vmax.f32 %v1128, 0.0
        %v1161 = vmax.f32 %v1129, 0.0
        %v1162 = vmax.f32 %v1130, 0.0
        %v1163 = vmax.f32 %v1131, 0.0
        %v1164 = vmax.f32 %v1132, 0.0
        %v1165 = vmax.f32 %v1133, 0.0
        %v1166 = vmax.f32 %v1134, 0.0
        %v1167 = vmax.f32 %v1135, 0.0
        %v1168 = vmax.f32 %v1136, 0.0
        %v1169 = vmax.f32 %v1137, 0.0
        %v1170 = vmax.f32 %v1138, 0.0
        %v1171 = vmax.f32 %v1139, 0.0
        %v1172 = vmax.f32 %v1140, 0.0
        %v1173 = vmax.f32 %v1141, 0.0
        %v1174 = vmax.f32 %v1142, 0.0
        %v1175 = vmax.f32 %v1143, 0.0
        %v1176 = vmin.f32 %v1144, 6.0
        %v1177 = vmin.f32 %v1145, 6.0
        %v1178 = vmin.f32 %v1146, 6.0
        %v1179 = vmin.f32 %v1147, 6.0
        %v1180 = vmin.f32 %v1148, 6.0
        %v1181 = vmin.f32 %v1149, 6.0
        %v1182 = vmin.f32 %v1150, 6.0
        %v1183 = vmin.f32 %v1151, 6.0
        %v1184 = vmin.f32 %v1152, 6.0
        %v1185 = vmin.f32 %v1153, 6.0
        %v1186 = vmin.f32 %v1154, 6.0
        %v1187 = vmin.f32 %v1155, 6.0
        %v1188 = vmin.f32 %v1156, 6.0
        %v1189 = vmin.f32 %v1157, 6.0
        %v1190 = vmin.f32 %v1158, 6.0
        %v1191 = vmin.f32 %v1159, 6.0
        %v1192 = vmin.f32 %v1160, 6.0
        %v1193 = vmin.f32 %v1161, 6.0
        %v1194 = vmin.f32 %v1162, 6.0
        %v1195 = vmin.f32 %v1163, 6.0
        %v1196 = vmin.f32 %v1164, 6.0
        %v1197 = vmin.f32 %v1165, 6.0
        %v1198 = vmin.f32 %v1166, 6.0
        %v1199 = vmin.f32 %v1167, 6.0
        %v1200 = vmin.f32 %v1168, 6.0
        %v1201 = vmin.f32 %v1169, 6.0
        %v1202 = vmin.f32 %v1170, 6.0
        %v1203 = vmin.f32 %v1171, 6.0
        %v1204 = vmin.f32 %v1172, 6.0
        %v1205 = vmin.f32 %v1173, 6.0
        %v1206 = vmin.f32 %v1174, 6.0
        %v1207 = vmin.f32 %v1175, 6.0
        %v1208 = vmul.f32 %v935, %v1176
        %v1209 = vmul.f32 %v937, %v1177
        %v1210 = vmul.f32 %v988, %v1178
        %v1211 = vmul.f32 %v990, %v1179
        %v1212 = vmul.f32 %v1041, %v1180
        %v1213 = vmul.f32 %v1043, %v1181
        %v1214 = vmul.f32 %v1094, %v1182
        %v1215 = vmul.f32 %v1096, %v1183
        %v1216 = vmul.f32 %v939, %v1184
        %v1217 = vmul.f32 %v941, %v1185
        %v1218 = vmul.f32 %v992, %v1186
        %v1219 = vmul.f32 %v994, %v1187
        %v1220 = vmul.f32 %v1045, %v1188
        %v1221 = vmul.f32 %v1047, %v1189
        %v1222 = vmul.f32 %v1098, %v1190
        %v1223 = vmul.f32 %v1100, %v1191
        %v1224 = vmul.f32 %v945, %v1192
        %v1225 = vmul.f32 %v947, %v1193
        %v1226 = vmul.f32 %v998, %v1194
        %v1227 = vmul.f32 %v1000, %v1195
        %v1228 = vmul.f32 %v1051, %v1196
        %v1229 = vmul.f32 %v1053, %v1197
        %v1230 = vmul.f32 %v1104, %v1198
        %v1231 = vmul.f32 %v1106, %v1199
        %v1232 = vmul.f32 %v949, %v1200
        %v1233 = vmul.f32 %v951, %v1201
        %v1234 = vmul.f32 %v1002, %v1202
        %v1235 = vmul.f32 %v1004, %v1203
        %v1236 = vmul.f32 %v1055, %v1204
        %v1237 = vmul.f32 %v1057, %v1205
        %v1238 = vmul.f32 %v1108, %v1206
        %v1239 = vmul.f32 %v1110, %v1207
        %v1240 = vmul.f32 %v1208, 0.16666667
        %v1241 = vmul.f32 %v1209, 0.16666667
        %v1242 = vmul.f32 %v1210, 0.16666667
        %v1243 = vmul.f32 %v1211, 0.16666667
        %v1244 = vmul.f32 %v1212, 0.16666667
        %v1245 = vmul.f32 %v1213, 0.16666667
        %v1246 = vmul.f32 %v1214, 0.16666667
        %v1247 = vmul.f32 %v1215, 0.16666667
        %v1248 = vmul.f32 %v1216, 0.16666667
        %v1249 = vmul.f32 %v1217, 0.16666667
        %v1250 = vmul.f32 %v1218, 0.16666667
        %v1251 = vmul.f32 %v1219, 0.16666667
        %v1252 = vmul.f32 %v1220, 0.16666667
        %v1253 = vmul.f32 %v1221, 0.16666667
        %v1254 = vmul.f32 %v1222, 0.16666667
        %v1255 = vmul.f32 %v1223, 0.16666667
        %v1256 = vmul.f32 %v1224, 0.16666667
        %v1257 = vmul.f32 %v1225, 0.16666667
        %v1258 = vmul.f32 %v1226, 0.16666667
        %v1259 = vmul.f32 %v1227, 0.16666667
        %v1260 = vmul.f32 %v1228, 0.16666667
        %v1261 = vmul.f32 %v1229, 0.16666667
        %v1262 = vmul.f32 %v1230, 0.16666667
        %v1263 = vmul.f32 %v1231, 0.16666667
        %v1264 = vmul.f32 %v1232, 0.16666667
        %v1265 = vmul.f32 %v1233, 0.16666667
        %v1266 = vmul.f32 %v1234, 0.16666667
        %v1267 = vmul.f32 %v1235, 0.16666667
        %v1268 = vmul.f32 %v1236, 0.16666667
        %v1269 = vmul.f32 %v1237, 0.16666667
        %v1270 = vmul.f32 %v1238, 0.16666667
        %v1271 = vmul.f32 %v1239, 0.16666667
        %v1272 = vld [vmem:[#allocation2] sm:$0xff]
        %v1273 = vld [vmem:[#allocation2 + $0x8] sm:$0xff]
        %v1274 = vadd.f32 %v1240, %v1248
        %v1275 = vrot.slane %v1274, 4
        %v1276 = vadd.f32 %v1274, %v1275
        %v1277 = vrot.slane %v1276, 2
        %v1278 = vadd.f32 %v1276, %v1277
        %v1279 = vrot.slane %v1278, 1
        %v1280 = vadd.f32 %v1278, %v1279
        %v1281 = vadd.f32 %v1241, %v1249
        %v1282 = vrot.slane %v1281, 4
        %v1283 = vadd.f32 %v1281, %v1282
        %v1284 = vrot.slane %v1283, 2
        %v1285 = vadd.f32 %v1283, %v1284
        %v1286 = vrot.slane %v1285, 1
        %v1287 = vadd.f32 %v1285, %v1286
        %v1288 = vadd.f32 %v1242, %v1250
        %v1289 = vrot.slane %v1288, 4
        %v1290 = vadd.f32 %v1288, %v1289
        %v1291 = vrot.slane %v1290, 2
        %v1292 = vadd.f32 %v1290, %v1291
        %v1293 = vrot.slane %v1292, 1
        %v1294 = vadd.f32 %v1292, %v1293
        %v1295 = vadd.f32 %v1243, %v1251
        %v1296 = vrot.slane %v1295, 4
        %v1297 = vadd.f32 %v1295, %v1296
        %v1298 = vrot.slane %v1297, 2
        %v1299 = vadd.f32 %v1297, %v1298
        %v1300 = vrot.slane %v1299, 1
        %v1301 = vadd.f32 %v1299, %v1300
        %v1302 = vadd.f32 %v1244, %v1252
        %v1303 = vrot.slane %v1302, 4
        %v1304 = vadd.f32 %v1302, %v1303
        %v1305 = vrot.slane %v1304, 2
        %v1306 = vadd.f32 %v1304, %v1305
        %v1307 = vrot.slane %v1306, 1
        %v1308 = vadd.f32 %v1306, %v1307
        %v1309 = vadd.f32 %v1245, %v1253
        %v1310 = vrot.slane %v1309, 4
        %v1311 = vadd.f32 %v1309, %v1310
        %v1312 = vrot.slane %v1311, 2
        %v1313 = vadd.f32 %v1311, %v1312
        %v1314 = vrot.slane %v1313, 1
        %v1315 = vadd.f32 %v1313, %v1314
        %v1316 = vadd.f32 %v1246, %v1254
        %v1317 = vrot.slane %v1316, 4
        %v1318 = vadd.f32 %v1316, %v1317
        %v1319 = vrot.slane %v1318, 2
        %v1320 = vadd.f32 %v1318, %v1319
        %v1321 = vrot.slane %v1320, 1
        %v1322 = vadd.f32 %v1320, %v1321
        %vm1323 = vcmask 523264
        %v1324 = vsel %vm1323, %v1247, 0.0
        %v1325 = vsel %vm1323, %v1255, 0.0
        %v1326 = vadd.f32 %v1324, %v1325
        %v1327 = vrot.slane %v1326, 4
        %v1328 = vadd.f32 %v1326, %v1327
        %v1329 = vrot.slane %v1328, 2
        %v1330 = vadd.f32 %v1328, %v1329
        %v1331 = vrot.slane %v1330, 1
        %v1332 = vadd.f32 %v1330, %v1331
        %v1333 = vadd.f32 %v1256, %v1264
        %v1334 = vrot.slane %v1333, 4
        %v1335 = vadd.f32 %v1333, %v1334
        %v1336 = vrot.slane %v1335, 2
        %v1337 = vadd.f32 %v1335, %v1336
        %v1338 = vrot.slane %v1337, 1
        %v1339 = vadd.f32 %v1337, %v1338
        %v1340 = vadd.f32 %v1257, %v1265
        %v1341 = vrot.slane %v1340, 4
        %v1342 = vadd.f32 %v1340, %v1341
        %v1343 = vrot.slane %v1342, 2
        %v1344 = vadd.f32 %v1342, %v1343
        %v1345 = vrot.slane %v1344, 1
        %v1346 = vadd.f32 %v1344, %v1345
        %v1347 = vadd.f32 %v1258, %v1266
        %v1348 = vrot.slane %v1347, 4
        %v1349 = vadd.f32 %v1347, %v1348
        %v1350 = vrot.slane %v1349, 2
        %v1351 = vadd.f32 %v1349, %v1350
        %v1352 = vrot.slane %v1351, 1
        %v1353 = vadd.f32 %v1351, %v1352
        %v1354 = vadd.f32 %v1259, %v1267
        %v1355 = vrot.slane %v1354, 4
        %v1356 = vadd.f32 %v1354, %v1355
        %v1357 = vrot.slane %v1356, 2
        %v1358 = vadd.f32 %v1356, %v1357
        %v1359 = vrot.slane %v1358, 1
        %v1360 = vadd.f32 %v1358, %v1359
        %v1361 = vadd.f32 %v1260, %v1268
        %v1362 = vrot.slane %v1361, 4
        %v1363 = vadd.f32 %v1361, %v1362
        %v1364 = vrot.slane %v1363, 2
        %v1365 = vadd.f32 %v1363, %v1364
        %v1366 = vrot.slane %v1365, 1
        %v1367 = vadd.f32 %v1365, %v1366
        %v1368 = vadd.f32 %v1261, %v1269
        %v1369 = vrot.slane %v1368, 4
        %v1370 = vadd.f32 %v1368, %v1369
        %v1371 = vrot.slane %v1370, 2
        %v1372 = vadd.f32 %v1370, %v1371
        %v1373 = vrot.slane %v1372, 1
        %v1374 = vadd.f32 %v1372, %v1373
        %v1375 = vadd.f32 %v1262, %v1270
        %v1376 = vrot.slane %v1375, 4
        %v1377 = vadd.f32 %v1375, %v1376
        %v1378 = vrot.slane %v1377, 2
        %v1379 = vadd.f32 %v1377, %v1378
        %v1380 = vrot.slane %v1379, 1
        %v1381 = vadd.f32 %v1379, %v1380
        %v1382 = vsel %vm1323, %v1263, 0.0
        %v1383 = vsel %vm1323, %v1271, 0.0
        %v1384 = vadd.f32 %v1382, %v1383
        %v1385 = vrot.slane %v1384, 4
        %v1386 = vadd.f32 %v1384, %v1385
        %v1387 = vrot.slane %v1386, 2
        %v1388 = vadd.f32 %v1386, %v1387
        %v1389 = vrot.slane %v1388, 1
        %v1390 = vadd.f32 %v1388, %v1389
        %v1407 = vcombine.low %v1280, %v1287
        %v1408 = vcombine.low %v1294, %v1301
        %v1410 = vunpack.c.l.s4 1983009808
        %v1411 = vunpack.c.0.s8 %v1410
        %v1412 = vlaneseq
        %v1413 = vshrl.u32 %v1412, 7
        %v1414 = vsub.s32 %v1411, %v1413
        %v1415 = vrot.slane %v1407, %v1414
        %v1417 = vunpack.c.l.s4 1983009808
        %v1418 = vunpack.c.0.s8 %v1417
        %v1419 = vlaneseq
        %v1420 = vshrl.u32 %v1419, 7
        %v1421 = vsub.s32 %v1418, %v1420
        %v1422 = vrot.slane %v1408, %v1421
        %v1423 = vcombine.low %v1415, %v1422
        %v1424 = vcombine.low %v1308, %v1315
        %v1425 = vcombine.low %v1322, %v1332
        %v1427 = vunpack.c.l.s4 1983009808
        %v1428 = vunpack.c.0.s8 %v1427
        %v1429 = vlaneseq
        %v1430 = vshrl.u32 %v1429, 7
        %v1431 = vsub.s32 %v1428, %v1430
        %v1432 = vrot.slane %v1424, %v1431
        %v1434 = vunpack.c.l.s4 1983009808
        %v1435 = vunpack.c.0.s8 %v1434
        %v1436 = vlaneseq
        %v1437 = vshrl.u32 %v1436, 7
        %v1438 = vsub.s32 %v1435, %v1437
        %v1439 = vrot.slane %v1425, %v1438
        %v1440 = vcombine.low %v1432, %v1439
        %v1441 = vcombine.low %v1339, %v1346
        %v1442 = vcombine.low %v1353, %v1360
        %v1444 = vunpack.c.l.s4 1983009808
        %v1445 = vunpack.c.0.s8 %v1444
        %v1446 = vlaneseq
        %v1447 = vshrl.u32 %v1446, 7
        %v1448 = vsub.s32 %v1445, %v1447
        %v1449 = vrot.slane %v1441, %v1448
        %v1451 = vunpack.c.l.s4 1983009808
        %v1452 = vunpack.c.0.s8 %v1451
        %v1453 = vlaneseq
        %v1454 = vshrl.u32 %v1453, 7
        %v1455 = vsub.s32 %v1452, %v1454
        %v1456 = vrot.slane %v1442, %v1455
        %v1457 = vcombine.low %v1449, %v1456
        %v1458 = vcombine.low %v1367, %v1374
        %v1459 = vcombine.low %v1381, %v1390
        %v1461 = vunpack.c.l.s4 1983009808
        %v1462 = vunpack.c.0.s8 %v1461
        %v1463 = vlaneseq
        %v1464 = vshrl.u32 %v1463, 7
        %v1465 = vsub.s32 %v1462, %v1464
        %v1466 = vrot.slane %v1458, %v1465
        %v1468 = vunpack.c.l.s4 1983009808
        %v1469 = vunpack.c.0.s8 %v1468
        %v1470 = vlaneseq
        %v1471 = vshrl.u32 %v1470, 7
        %v1472 = vsub.s32 %v1469, %v1471
        %v1473 = vrot.slane %v1459, %v1472
        %v1474 = vcombine.low %v1466, %v1473
        %vm1475 = vcmask 1044484
        %v1476 = vsel %vm1475, %v1423, %v1423
        %vm1477 = vcmask 1046534
        %v1478 = vsel %vm1477, %v1423, %v1476
        %v1479 = vrot.slane %v1457, 7
        %vm1480 = vcmask 1041409
        %v1481 = vsel %vm1480, %v1479, %v1478
        %vm1482 = vcmask 1043459
        %v1483 = vsel %vm1482, %v1479, %v1481
        %vm1484 = vcmask 1045509
        %v1485 = vsel %vm1484, %v1479, %v1483
        %vm1486 = vcmask 1047559
        %v1487 = vsel %vm1486, %v1479, %v1485
        %v1488 = vsel %vm1475, %v1440, %v1440
        %v1489 = vsel %vm1477, %v1440, %v1488
        %v1490 = vrot.slane %v1474, 7
        %v1491 = vsel %vm1480, %v1490, %v1489
        %v1492 = vsel %vm1482, %v1490, %v1491
        %v1493 = vsel %vm1484, %v1490, %v1492
        %v1494 = vsel %vm1486, %v1490, %v1493
        %v1497 = vadd.f32 %v1272, %v1487
        %v1498 = vadd.f32 %v1273, %v1494
        %1499 = vst [vmem:[#allocation2] sm:$0xff] %v1497
        %vm1500 = vcmask 1041408
        %vm1501 = vcmask 1043458
        %vm1502 = vmor %vm1501, %vm1500
        %vm1503 = vcmask 1045508
        %vm1504 = vmor %vm1503, %vm1502
        %vm1505 = vcmask 523270
        %vm1506 = vmor %vm1505, %vm1504
        %1507 = vst.msk [vmem:[#allocation2 + $0x8] sm:$0xff] %vm1506, %v1498
        %p1508 = scmp.eq.s32.totalorder %s27, 2
        // Predicated region
        $region65: #{_lambda_.1} parent=39 // pred_check
          %p1509 = pneg %p1508
        $region66: #{_lambda_.1} parent=39 // pred_check_branch
          %1511 = sbr.rel (%p1509) target = $region68
        $region67: #{_lambda_.1} parent=39 // pred_region
          %v1512 = vld [vmem:[#allocation2] sm:$0xff]
          %v1513 = vld [vmem:[#allocation2 + $0x8] sm:$0xff]
          %v1514 = vld [vmem:[#allocation8] sm:$0xff]
          %v1515 = vadd.f32 %v1514, 3.0
          %v1516 = vmax.f32 %v1515, 0.0
          %v1517 = vmin.f32 %v1516, 6.0
          %v1518 = vmul.f32 %v1514, %v1517
          %v1519 = vmul.f32 %v1518, 0.16666667
          %v1520 = vmul.f32 %v1519, 12.0
          %v1522 = vlaneseq
          %v1523 = vshrl.u32 %v1522, 7
          %v1524 = vsub.s32 0, %v1523
          %v1525 = vrot.slane %v1520, %v1524
          %v1526 = vlaneseq
          %v1527 = vshrl.u32 %v1526, 7
          %v1528 = vsub.s32 1, %v1527
          %v1529 = vrot.slane %v1520, %v1528
          %v1530 = vlaneseq
          %v1531 = vshrl.u32 %v1530, 7
          %v1532 = vsub.s32 2, %v1531
          %v1533 = vrot.slane %v1520, %v1532
          %v1534 = vlaneseq
          %v1535 = vshrl.u32 %v1534, 7
          %v1536 = vsub.s32 3, %v1535
          %v1537 = vrot.slane %v1520, %v1536
          %v1538 = vlaneseq
          %v1539 = vshrl.u32 %v1538, 7
          %v1540 = vsub.s32 4, %v1539
          %v1541 = vrot.slane %v1520, %v1540
          %v1542 = vlaneseq
          %v1543 = vshrl.u32 %v1542, 7
          %v1544 = vsub.s32 5, %v1543
          %v1545 = vrot.slane %v1520, %v1544
          %v1546 = vlaneseq
          %v1547 = vshrl.u32 %v1546, 7
          %v1548 = vsub.s32 6, %v1547
          %v1549 = vrot.slane %v1520, %v1548
          %v1550 = vlaneseq
          %v1551 = vshrl.u32 %v1550, 7
          %v1552 = vsub.s32 7, %v1551
          %v1553 = vrot.slane %v1520, %v1552
          %v1554 = vcombine.low %v1525, %v1529
          %v1555 = vcombine.low %v1533, %v1537
          %v1557 = vunpack.c.l.s4 1983009808
          %v1558 = vunpack.c.0.s8 %v1557
          %v1559 = vlaneseq
          %v1560 = vshrl.u32 %v1559, 7
          %v1561 = vsub.s32 %v1558, %v1560
          %v1562 = vrot.slane %v1554, %v1561
          %v1564 = vunpack.c.l.s4 1983009808
          %v1565 = vunpack.c.0.s8 %v1564
          %v1566 = vlaneseq
          %v1567 = vshrl.u32 %v1566, 7
          %v1568 = vsub.s32 %v1565, %v1567
          %v1569 = vrot.slane %v1555, %v1568
          %v1570 = vcombine.low %v1562, %v1569
          %v1571 = vcombine.low %v1541, %v1545
          %v1572 = vcombine.low %v1549, %v1553
          %v1574 = vunpack.c.l.s4 1983009808
          %v1575 = vunpack.c.0.s8 %v1574
          %v1576 = vlaneseq
          %v1577 = vshrl.u32 %v1576, 7
          %v1578 = vsub.s32 %v1575, %v1577
          %v1579 = vrot.slane %v1571, %v1578
          %v1581 = vunpack.c.l.s4 1983009808
          %v1582 = vunpack.c.0.s8 %v1581
          %v1583 = vlaneseq
          %v1584 = vshrl.u32 %v1583, 7
          %v1585 = vsub.s32 %v1582, %v1584
          %v1586 = vrot.slane %v1572, %v1585
          %v1587 = vcombine.low %v1579, %v1586
          %v1590 = vsub.f32 %v1512, %v1570
          %v1591 = vsub.f32 %v1513, %v1587
          %v1592 = vmul.f32 %v1590, 0.027777778
          %v1593 = vmul.f32 %v1591, 0.027777778
          %v1594 = vld [vmem:[#allocation9] sm:$0xff]
          %v1595 = vld [vmem:[#allocation9 + $0x8] sm:$0xff]
          %v1596 = vld [vmem:[#allocation9 + $0x10] sm:$0xff]
          %v1597 = vld [vmem:[#allocation9 + $0x18] sm:$0xff]
          %v1598 = vld [vmem:[#allocation9 + $0x20] sm:$0xff]
          %v1599 = vld [vmem:[#allocation9 + $0x28] sm:$0xff]
          %v1600 = vld [vmem:[#allocation9 + $0x30] sm:$0xff]
          %v1601 = vld [vmem:[#allocation9 + $0x38] sm:$0xff]
          %v1602 = vld [vmem:[#allocation9 + $0x40] sm:$0xff]
          %v1603 = vld [vmem:[#allocation9 + $0x48] sm:$0xff]
          %v1604 = vld [vmem:[#allocation9 + $0x50] sm:$0xff]
          %v1605 = vld [vmem:[#allocation9 + $0x58] sm:$0xff]
          %v1606 = vld [vmem:[#allocation9 + $0x60] sm:$0xff]
          %v1607 = vld [vmem:[#allocation9 + $0x68] sm:$0xff]
          %v1608 = vld [vmem:[#allocation9 + $0x70] sm:$0xff]
          %v1609 = vld [vmem:[#allocation9 + $0x78] sm:$0xff]
          %v1610 = vld [vmem:[#allocation9 + $0x80] sm:$0xff]
          %v1611 = vld [vmem:[#allocation9 + $0x88] sm:$0xff]
          %v1612 = vld [vmem:[#allocation9 + $0x90] sm:$0xff]
          %v1613 = vld [vmem:[#allocation9 + $0x98] sm:$0xff]
          %v1614 = vld [vmem:[#allocation9 + $0xa0] sm:$0xff]
          %v1615 = vld [vmem:[#allocation9 + $0xa8] sm:$0xff]
          %v1616 = vld [vmem:[#allocation9 + $0xb0] sm:$0xff]
          %v1617 = vld [vmem:[#allocation9 + $0xb8] sm:$0xff]
          %v1618 = vld [vmem:[#allocation9 + $0xc0] sm:$0xff]
          %v1619 = vld [vmem:[#allocation9 + $0xc8] sm:$0xff]
          %v1620 = vld [vmem:[#allocation9 + $0xd0] sm:$0xff]
          %v1621 = vld [vmem:[#allocation9 + $0xd8] sm:$0xff]
          %v1622 = vld [vmem:[#allocation9 + $0xe0] sm:$0xff]
          %v1623 = vld [vmem:[#allocation9 + $0xe8] sm:$0xff]
          %v1624 = vld [vmem:[#allocation9 + $0xf0] sm:$0xff]
          %v1625 = vld [vmem:[#allocation9 + $0xf8] sm:$0xff]
          %v1626 = vld [vmem:[#allocation9 + $0x100] sm:$0xff]
          %v1627 = vld [vmem:[#allocation9 + $0x108] sm:$0xff]
          %v1628 = vld [vmem:[#allocation9 + $0x110] sm:$0xff]
          %v1629 = vld [vmem:[#allocation9 + $0x118] sm:$0xff]
          %v1630 = vld [vmem:[#allocation9 + $0x120] sm:$0xff]
          %v1631 = vld [vmem:[#allocation9 + $0x128] sm:$0xff]
          %v1632 = vld [vmem:[#allocation9 + $0x130] sm:$0xff]
          %v1633 = vld [vmem:[#allocation9 + $0x138] sm:$0xff]
          %v1634 = vld [vmem:[#allocation9 + $0x140] sm:$0xff]
          %v1635 = vld [vmem:[#allocation9 + $0x148] sm:$0xff]
          %v1636 = vld [vmem:[#allocation9 + $0x150] sm:$0xff]
          %v1637 = vld [vmem:[#allocation9 + $0x158] sm:$0xff]
          %v1638 = vld [vmem:[#allocation9 + $0x160] sm:$0xff]
          %v1639 = vld [vmem:[#allocation9 + $0x168] sm:$0xff]
          %v1640 = vld [vmem:[#allocation9 + $0x170] sm:$0xff]
          %v1641 = vld [vmem:[#allocation9 + $0x178] sm:$0xff]
          %v1642 = vld [vmem:[#allocation9 + $0x180] sm:$0xff]
          %v1643 = vld [vmem:[#allocation9 + $0x188] sm:$0xff]
          %v1644 = vld [vmem:[#allocation9 + $0x190] sm:$0xff]
          %v1645 = vld [vmem:[#allocation9 + $0x198] sm:$0xff]
          %v1646 = vld [vmem:[#allocation9 + $0x1a0] sm:$0xff]
          %v1647 = vld [vmem:[#allocation9 + $0x1a8] sm:$0xff]
          %v1648 = vld [vmem:[#allocation9 + $0x1b0] sm:$0xff]
          %v1649 = vld [vmem:[#allocation9 + $0x1b8] sm:$0xff]
          %v1650 = vld [vmem:[#allocation9 + $0x1c0] sm:$0xff]
          %v1651 = vld [vmem:[#allocation9 + $0x1c8] sm:$0xff]
          %v1652 = vld [vmem:[#allocation9 + $0x1d0] sm:$0xff]
          %v1653 = vld [vmem:[#allocation9 + $0x1d8] sm:$0xff]
          %v1654 = vld [vmem:[#allocation9 + $0x1e0] sm:$0xff]
          %v1655 = vld [vmem:[#allocation9 + $0x1e8] sm:$0xff]
          %v1656 = vld [vmem:[#allocation9 + $0x1f0] sm:$0xff]
          %v1657 = vld [vmem:[#allocation9 + $0x1f8] sm:$0xff]
          %v1658 = vld [vmem:[#allocation9 + $0x200] sm:$0xff]
          %v1659 = vld [vmem:[#allocation9 + $0x208] sm:$0xff]
          %v1660 = vld [vmem:[#allocation9 + $0x210] sm:$0xff]
          %v1661 = vld [vmem:[#allocation9 + $0x218] sm:$0xff]
          %v1662 = vld [vmem:[#allocation9 + $0x220] sm:$0xff]
          %v1663 = vld [vmem:[#allocation9 + $0x228] sm:$0xff]
          %v1664 = vld [vmem:[#allocation9 + $0x230] sm:$0xff]
          %v1665 = vld [vmem:[#allocation9 + $0x238] sm:$0xff]
          %v1666 = vld [vmem:[#allocation9 + $0x240] sm:$0xff]
          %v1667 = vld [vmem:[#allocation9 + $0x248] sm:$0xff]
          %v1668 = vld [vmem:[#allocation9 + $0x250] sm:$0xff]
          %v1669 = vld [vmem:[#allocation9 + $0x258] sm:$0xff]
          %v1670 = vld [vmem:[#allocation9 + $0x260] sm:$0xff]
          %v1671 = vld [vmem:[#allocation9 + $0x268] sm:$0xff]
          %v1672 = vld [vmem:[#allocation9 + $0x270] sm:$0xff]
          %v1673 = vld [vmem:[#allocation9 + $0x278] sm:$0xff]
          %v1674 = vld [vmem:[#allocation9 + $0x280] sm:$0xff]
          %v1675 = vld [vmem:[#allocation9 + $0x288] sm:$0xff]
          %v1676 = vld [vmem:[#allocation9 + $0x290] sm:$0xff]
          %v1677 = vld [vmem:[#allocation9 + $0x298] sm:$0xff]
          %v1678 = vld [vmem:[#allocation9 + $0x2a0] sm:$0xff]
          %v1679 = vld [vmem:[#allocation9 + $0x2a8] sm:$0xff]
          %v1680 = vld [vmem:[#allocation9 + $0x2b0] sm:$0xff]
          %v1681 = vld [vmem:[#allocation9 + $0x2b8] sm:$0xff]
          %v1682 = vld [vmem:[#allocation9 + $0x2c0] sm:$0xff]
          %v1683 = vld [vmem:[#allocation9 + $0x2c8] sm:$0xff]
          %v1684 = vld [vmem:[#allocation9 + $0x2d0] sm:$0xff]
          %v1685 = vld [vmem:[#allocation9 + $0x2d8] sm:$0xff]
          %v1686 = vld [vmem:[#allocation9 + $0x2e0] sm:$0xff]
          %v1687 = vld [vmem:[#allocation9 + $0x2e8] sm:$0xff]
          %v1688 = vld [vmem:[#allocation9 + $0x2f0] sm:$0xff]
          %v1689 = vld [vmem:[#allocation9 + $0x2f8] sm:$0xff]
          %v1690 = vld [vmem:[#allocation9 + $0x300] sm:$0xff]
          %v1691 = vld [vmem:[#allocation9 + $0x308] sm:$0xff]
          %v1692 = vld [vmem:[#allocation9 + $0x310] sm:$0xff]
          %v1693 = vld [vmem:[#allocation9 + $0x318] sm:$0xff]
          %v1694 = vld [vmem:[#allocation9 + $0x320] sm:$0xff]
          %v1695 = vld [vmem:[#allocation9 + $0x328] sm:$0xff]
          %v1696 = vld [vmem:[#allocation9 + $0x330] sm:$0xff]
          %v1697 = vld [vmem:[#allocation9 + $0x338] sm:$0xff]
          %v1698 = vld [vmem:[#allocation9 + $0x340] sm:$0xff]
          %v1699 = vld [vmem:[#allocation9 + $0x348] sm:$0xff]
          %v1700 = vld [vmem:[#allocation9 + $0x350] sm:$0xff]
          %v1701 = vld [vmem:[#allocation9 + $0x358] sm:$0xff]
          %v1702 = vld [vmem:[#allocation9 + $0x360] sm:$0xff]
          %v1703 = vld [vmem:[#allocation9 + $0x368] sm:$0xff]
          %v1704 = vld [vmem:[#allocation9 + $0x370] sm:$0xff]
          %v1705 = vld [vmem:[#allocation9 + $0x378] sm:$0xff]
          %v1706 = vld [vmem:[#allocation9 + $0x380] sm:$0xff]
          %v1707 = vld [vmem:[#allocation9 + $0x388] sm:$0xff]
          %v1708 = vld [vmem:[#allocation9 + $0x390] sm:$0xff]
          %v1709 = vld [vmem:[#allocation9 + $0x398] sm:$0xff]
          %v1710 = vld [vmem:[#allocation9 + $0x3a0] sm:$0xff]
          %v1711 = vld [vmem:[#allocation9 + $0x3a8] sm:$0xff]
          %v1712 = vld [vmem:[#allocation9 + $0x3b0] sm:$0xff]
          %v1713 = vld [vmem:[#allocation9 + $0x3b8] sm:$0xff]
          %v1714 = vld [vmem:[#allocation11] sm:$0x1]
          %v1716 = vlaneseq
          %v1717 = vshrl.u32 %v1716, 7
          %v1718 = vsub.s32 0, %v1717
          %v1719 = vrot.slane %v1714, %v1718
          %v1723 = vcombine.high %v1592, %v1592
          %v1725 = vunpack.c.l.s4 1983009808
          %v1726 = vunpack.c.0.s8 %v1725
          %v1727 = vlaneseq
          %v1728 = vshrl.u32 %v1727, 7
          %v1729 = vsub.s32 %v1726, %v1728
          %v1730 = vrot.slane %v1592, %v1729
          %v1732 = vunpack.c.l.s4 1983009808
          %v1733 = vunpack.c.0.s8 %v1732
          %v1734 = vlaneseq
          %v1735 = vshrl.u32 %v1734, 7
          %v1736 = vsub.s32 %v1733, %v1735
          %v1737 = vrot.slane %v1723, %v1736
          %v1738 = vcombine.high %v1730, %v1730
          %v1739 = vcombine.high %v1737, %v1737
          %v1740 = vcombine.high %v1593, %v1593
          %v1742 = vunpack.c.l.s4 1983009808
          %v1743 = vunpack.c.0.s8 %v1742
          %v1744 = vlaneseq
          %v1745 = vshrl.u32 %v1744, 7
          %v1746 = vsub.s32 %v1743, %v1745
          %v1747 = vrot.slane %v1593, %v1746
          %v1749 = vunpack.c.l.s4 1983009808
          %v1750 = vunpack.c.0.s8 %v1749
          %v1751 = vlaneseq
          %v1752 = vshrl.u32 %v1751, 7
          %v1753 = vsub.s32 %v1750, %v1752
          %v1754 = vrot.slane %v1740, %v1753
          %v1755 = vcombine.high %v1747, %v1747
          %v1756 = vcombine.high %v1754, %v1754
          %v1764 = vsel %vm1323, %v1756, 0
          %1766 = vmatprep.subr.mxu0 0.0
          %1767 = vmatpush1.msra.mxu0 %v1594
          %1768 = vmatprep.subr.mxu0 0.0
          %1769 = vmatpush1.msra.mxu0 %v1595
          %1770 = vmatprep.subr.mxu0 0.0
          %1771 = vmatpush1.msra.mxu0 %v1596
          %1772 = vmatprep.subr.mxu0 0.0
          %1773 = vmatpush1.msra.mxu0 %v1597
          %1774 = vmatprep.subr.mxu0 0.0
          %1775 = vmatpush1.msra.mxu0 %v1598
          %1776 = vmatprep.subr.mxu0 0.0
          %1777 = vmatpush1.msra.mxu0 %v1599
          %1778 = vmatprep.subr.mxu0 0.0
          %1779 = vmatpush1.msra.mxu0 %v1600
          %1780 = vmatprep.subr.mxu0 0.0
          %1781 = vmatpush1.msra.mxu0 %v1601
          %1782 = vmatprep.subr.mxu0 0.0
          %1783 = vmatpush1.msra.mxu0 %v1602
          %1784 = vmatprep.subr.mxu0 0.0
          %1785 = vmatpush1.msra.mxu0 %v1603
          %1786 = vmatprep.subr.mxu0 0.0
          %1787 = vmatpush1.msra.mxu0 %v1604
          %1788 = vmatprep.subr.mxu0 0.0
          %1789 = vmatpush1.msra.mxu0 %v1605
          %1790 = vmatprep.subr.mxu0 0.0
          %1791 = vmatpush1.msra.mxu0 %v1606
          %1792 = vmatprep.subr.mxu0 0.0
          %1793 = vmatpush1.msra.mxu0 %v1607
          %1794 = vmatprep.subr.mxu0 0.0
          %1795 = vmatpush1.msra.mxu0 %v1608
          %1796 = vmatprep.subr.mxu0 0.0
          %1797 = vmatpush1.msra.mxu0 %v1609
          %1798 = vmatprep.subr.mxu0 0.0
          %1799 = vmatpush1.msra.mxu0 %v1610
          %1800 = vmatprep.subr.mxu0 0.0
          %1801 = vmatpush1.msra.mxu0 %v1611
          %1802 = vmatprep.subr.mxu0 0.0
          %1803 = vmatpush1.msra.mxu0 %v1612
          %1804 = vmatprep.subr.mxu0 0.0
          %1805 = vmatpush1.msra.mxu0 %v1613
          %1806 = vmatprep.subr.mxu0 0.0
          %1807 = vmatpush1.msra.mxu0 %v1614
          %1808 = vmatprep.subr.mxu0 0.0
          %1809 = vmatpush1.msra.mxu0 %v1615
          %1810 = vmatprep.subr.mxu0 0.0
          %1811 = vmatpush1.msra.mxu0 %v1616
          %1812 = vmatprep.subr.mxu0 0.0
          %1813 = vmatpush1.msra.mxu0 %v1617
          %1814 = vmatprep.subr.mxu0 0.0
          %1815 = vmatpush1.msra.mxu0 %v1618
          %1816 = vmatprep.subr.mxu0 0.0
          %1817 = vmatpush1.msra.mxu0 %v1619
          %1818 = vmatprep.subr.mxu0 0.0
          %1819 = vmatpush1.msra.mxu0 %v1620
          %1820 = vmatprep.subr.mxu0 0.0
          %1821 = vmatpush1.msra.mxu0 %v1621
          %1822 = vmatprep.subr.mxu0 0.0
          %1823 = vmatpush1.msra.mxu0 %v1622
          %1824 = vmatprep.subr.mxu0 0.0
          %1825 = vmatpush1.msra.mxu0 %v1623
          %1826 = vmatprep.subr.mxu0 0.0
          %1827 = vmatpush1.msra.mxu0 %v1624
          %1828 = vmatprep.subr.mxu0 0.0
          %1829 = vmatpush1.msra.mxu0 %v1625
          %1830 = vmatprep.mubr.f32.mxu0 %v1738
          %1831 = vmatmul.mubr.f32.gmra.mrb[0].mxu0 %v1730
          %v1832 = vpop.f32.mrb[0].mxu0
          %v1833 = vadd.f32 %v1719, %v1832
          %v1834 = vpop.f32.mrb[0].mxu0
          %1835 = vdwg.mxu0
          %1836 = vmatprep.subr.mxu0 0.0
          %1837 = vmatpush1.msra.mxu0 %v1626
          %1838 = vmatprep.subr.mxu0 0.0
          %1839 = vmatpush1.msra.mxu0 %v1627
          %1840 = vmatprep.subr.mxu0 0.0
          %1841 = vmatpush1.msra.mxu0 %v1628
          %1842 = vmatprep.subr.mxu0 0.0
          %1843 = vmatpush1.msra.mxu0 %v1629
          %1844 = vmatprep.subr.mxu0 0.0
          %1845 = vmatpush1.msra.mxu0 %v1630
          %1846 = vmatprep.subr.mxu0 0.0
          %1847 = vmatpush1.msra.mxu0 %v1631
          %1848 = vmatprep.subr.mxu0 0.0
          %1849 = vmatpush1.msra.mxu0 %v1632
          %1850 = vmatprep.subr.mxu0 0.0
          %1851 = vmatpush1.msra.mxu0 %v1633
          %1852 = vmatprep.subr.mxu0 0.0
          %1853 = vmatpush1.msra.mxu0 %v1634
          %1854 = vmatprep.subr.mxu0 0.0
          %1855 = vmatpush1.msra.mxu0 %v1635
          %1856 = vmatprep.subr.mxu0 0.0
          %1857 = vmatpush1.msra.mxu0 %v1636
          %1858 = vmatprep.subr.mxu0 0.0
          %1859 = vmatpush1.msra.mxu0 %v1637
          %1860 = vmatprep.subr.mxu0 0.0
          %1861 = vmatpush1.msra.mxu0 %v1638
          %1862 = vmatprep.subr.mxu0 0.0
          %1863 = vmatpush1.msra.mxu0 %v1639
          %1864 = vmatprep.subr.mxu0 0.0
          %1865 = vmatpush1.msra.mxu0 %v1640
          %1866 = vmatprep.subr.mxu0 0.0
          %1867 = vmatpush1.msra.mxu0 %v1641
          %1868 = vmatprep.subr.mxu0 0.0
          %1869 = vmatpush1.msra.mxu0 %v1642
          %1870 = vmatprep.subr.mxu0 0.0
          %1871 = vmatpush1.msra.mxu0 %v1643
          %1872 = vmatprep.subr.mxu0 0.0
          %1873 = vmatpush1.msra.mxu0 %v1644
          %1874 = vmatprep.subr.mxu0 0.0
          %1875 = vmatpush1.msra.mxu0 %v1645
          %1876 = vmatprep.subr.mxu0 0.0
          %1877 = vmatpush1.msra.mxu0 %v1646
          %1878 = vmatprep.subr.mxu0 0.0
          %1879 = vmatpush1.msra.mxu0 %v1647
          %1880 = vmatprep.subr.mxu0 0.0
          %1881 = vmatpush1.msra.mxu0 %v1648
          %1882 = vmatprep.subr.mxu0 0.0
          %1883 = vmatpush1.msra.mxu0 %v1649
          %1884 = vmatprep.subr.mxu0 0.0
          %1885 = vmatpush1.msra.mxu0 %v1650
          %1886 = vmatprep.subr.mxu0 0.0
          %1887 = vmatpush1.msra.mxu0 %v1651
          %1888 = vmatprep.subr.mxu0 0.0
          %1889 = vmatpush1.msra.mxu0 %v1652
          %1890 = vmatprep.subr.mxu0 0.0
          %1891 = vmatpush1.msra.mxu0 %v1653
          %1892 = vmatprep.subr.mxu0 0.0
          %1893 = vmatpush1.msra.mxu0 %v1654
          %1894 = vmatprep.subr.mxu0 0.0
          %1895 = vmatpush1.msra.mxu0 %v1655
          %1896 = vmatprep.subr.mxu0 0.0
          %1897 = vmatpush1.msra.mxu0 %v1656
          %1898 = vmatprep.subr.mxu0 0.0
          %1899 = vmatpush1.msra.mxu0 %v1657
          %1900 = vmatprep.mubr.f32.mxu0 %v1739
          %1901 = vmatmul.mubr.f32.gmra.mrb[0].mxu0 %v1737
          %v1902 = vpop.f32.mrb[0].mxu0
          %v1903 = vadd.f32 %v1833, %v1902
          %v1904 = vpop.f32.mrb[0].mxu0
          %1905 = vdwg.mxu0
          %1906 = vmatprep.subr.mxu0 0.0
          %1907 = vmatpush1.msra.mxu0 %v1658
          %1908 = vmatprep.subr.mxu0 0.0
          %1909 = vmatpush1.msra.mxu0 %v1659
          %1910 = vmatprep.subr.mxu0 0.0
          %1911 = vmatpush1.msra.mxu0 %v1660
          %1912 = vmatprep.subr.mxu0 0.0
          %1913 = vmatpush1.msra.mxu0 %v1661
          %1914 = vmatprep.subr.mxu0 0.0
          %1915 = vmatpush1.msra.mxu0 %v1662
          %1916 = vmatprep.subr.mxu0 0.0
          %1917 = vmatpush1.msra.mxu0 %v1663
          %1918 = vmatprep.subr.mxu0 0.0
          %1919 = vmatpush1.msra.mxu0 %v1664
          %1920 = vmatprep.subr.mxu0 0.0
          %1921 = vmatpush1.msra.mxu0 %v1665
          %1922 = vmatprep.subr.mxu0 0.0
          %1923 = vmatpush1.msra.mxu0 %v1666
          %1924 = vmatprep.subr.mxu0 0.0
          %1925 = vmatpush1.msra.mxu0 %v1667
          %1926 = vmatprep.subr.mxu0 0.0
          %1927 = vmatpush1.msra.mxu0 %v1668
          %1928 = vmatprep.subr.mxu0 0.0
          %1929 = vmatpush1.msra.mxu0 %v1669
          %1930 = vmatprep.subr.mxu0 0.0
          %1931 = vmatpush1.msra.mxu0 %v1670
          %1932 = vmatprep.subr.mxu0 0.0
          %1933 = vmatpush1.msra.mxu0 %v1671
          %1934 = vmatprep.subr.mxu0 0.0
          %1935 = vmatpush1.msra.mxu0 %v1672
          %1936 = vmatprep.subr.mxu0 0.0
          %1937 = vmatpush1.msra.mxu0 %v1673
          %1938 = vmatprep.subr.mxu0 0.0
          %1939 = vmatpush1.msra.mxu0 %v1674
          %1940 = vmatprep.subr.mxu0 0.0
          %1941 = vmatpush1.msra.mxu0 %v1675
          %1942 = vmatprep.subr.mxu0 0.0
          %1943 = vmatpush1.msra.mxu0 %v1676
          %1944 = vmatprep.subr.mxu0 0.0
          %1945 = vmatpush1.msra.mxu0 %v1677
          %1946 = vmatprep.subr.mxu0 0.0
          %1947 = vmatpush1.msra.mxu0 %v1678
          %1948 = vmatprep.subr.mxu0 0.0
          %1949 = vmatpush1.msra.mxu0 %v1679
          %1950 = vmatprep.subr.mxu0 0.0
          %1951 = vmatpush1.msra.mxu0 %v1680
          %1952 = vmatprep.subr.mxu0 0.0
          %1953 = vmatpush1.msra.mxu0 %v1681
          %1954 = vmatprep.subr.mxu0 0.0
          %1955 = vmatpush1.msra.mxu0 %v1682
          %1956 = vmatprep.subr.mxu0 0.0
          %1957 = vmatpush1.msra.mxu0 %v1683
          %1958 = vmatprep.subr.mxu0 0.0
          %1959 = vmatpush1.msra.mxu0 %v1684
          %1960 = vmatprep.subr.mxu0 0.0
          %1961 = vmatpush1.msra.mxu0 %v1685
          %1962 = vmatprep.subr.mxu0 0.0
          %1963 = vmatpush1.msra.mxu0 %v1686
          %1964 = vmatprep.subr.mxu0 0.0
          %1965 = vmatpush1.msra.mxu0 %v1687
          %1966 = vmatprep.subr.mxu0 0.0
          %1967 = vmatpush1.msra.mxu0 %v1688
          %1968 = vmatprep.subr.mxu0 0.0
          %1969 = vmatpush1.msra.mxu0 %v1689
          %1970 = vmatprep.mubr.f32.mxu0 %v1755
          %1971 = vmatmul.mubr.f32.gmra.mrb[0].mxu0 %v1747
          %v1972 = vpop.f32.mrb[0].mxu0
          %v1973 = vadd.f32 %v1903, %v1972
          %v1974 = vpop.f32.mrb[0].mxu0
          %1975 = vdwg.mxu0
          %1976 = vmatprep.subr.mxu0 0.0
          %1977 = vmatpush1.msra.mxu0 %v1690
          %1978 = vmatprep.subr.mxu0 0.0
          %1979 = vmatpush1.msra.mxu0 %v1691
          %1980 = vmatprep.subr.mxu0 0.0
          %1981 = vmatpush1.msra.mxu0 %v1692
          %1982 = vmatprep.subr.mxu0 0.0
          %1983 = vmatpush1.msra.mxu0 %v1693
          %1984 = vmatprep.subr.mxu0 0.0
          %1985 = vmatpush1.msra.mxu0 %v1694
          %1986 = vmatprep.subr.mxu0 0.0
          %1987 = vmatpush1.msra.mxu0 %v1695
          %1988 = vmatprep.subr.mxu0 0.0
          %1989 = vmatpush1.msra.mxu0 %v1696
          %1990 = vmatprep.subr.mxu0 0.0
          %1991 = vmatpush1.msra.mxu0 %v1697
          %1992 = vmatprep.subr.mxu0 0.0
          %1993 = vmatpush1.msra.mxu0 %v1698
          %1994 = vmatprep.subr.mxu0 0.0
          %1995 = vmatpush1.msra.mxu0 %v1699
          %1996 = vmatprep.subr.mxu0 0.0
          %1997 = vmatpush1.msra.mxu0 %v1700
          %1998 = vmatprep.subr.mxu0 0.0
          %1999 = vmatpush1.msra.mxu0 %v1701
          %2000 = vmatprep.subr.mxu0 0.0
          %2001 = vmatpush1.msra.mxu0 %v1702
          %2002 = vmatprep.subr.mxu0 0.0
          %2003 = vmatpush1.msra.mxu0 %v1703
          %2004 = vmatprep.subr.mxu0 0.0
          %2005 = vmatpush1.msra.mxu0 %v1704
          %2006 = vmatprep.subr.mxu0 0.0
          %2007 = vmatpush1.msra.mxu0 %v1705
          %2008 = vmatprep.subr.mxu0 0.0
          %2009 = vmatpush1.msra.mxu0 %v1706
          %2010 = vmatprep.subr.mxu0 0.0
          %2011 = vmatpush1.msra.mxu0 %v1707
          %2012 = vmatprep.subr.mxu0 0.0
          %2013 = vmatpush1.msra.mxu0 %v1708
          %2014 = vmatprep.subr.mxu0 0.0
          %2015 = vmatpush1.msra.mxu0 %v1709
          %2016 = vmatprep.subr.mxu0 0.0
          %2017 = vmatpush1.msra.mxu0 %v1710
          %2018 = vmatprep.subr.mxu0 0.0
          %2019 = vmatpush1.msra.mxu0 %v1711
          %2020 = vmatprep.subr.mxu0 0.0
          %2021 = vmatpush1.msra.mxu0 %v1712
          %2022 = vmatprep.subr.mxu0 0.0
          %2023 = vmatpush1.msra.mxu0 %v1713
          %2024 = vmatprep.subr.mxu0 0.0
          %2025 = vmatpush1.msra.mxu0 0.0
          %2026 = vmatprep.subr.mxu0 0.0
          %2027 = vmatpush1.msra.mxu0 0.0
          %2028 = vmatprep.subr.mxu0 0.0
          %2029 = vmatpush1.msra.mxu0 0.0
          %2030 = vmatprep.subr.mxu0 0.0
          %2031 = vmatpush1.msra.mxu0 0.0
          %2032 = vmatprep.subr.mxu0 0.0
          %2033 = vmatpush1.msra.mxu0 0.0
          %2034 = vmatprep.subr.mxu0 0.0
          %2035 = vmatpush1.msra.mxu0 0.0
          %2036 = vmatprep.subr.mxu0 0.0
          %2037 = vmatpush1.msra.mxu0 0.0
          %2038 = vmatprep.subr.mxu0 0.0
          %2039 = vmatpush1.msra.mxu0 0.0
          %2040 = vmatprep.mubr.f32.mxu0 %v1764
          %2041 = vmatmul.mubr.f32.gmra.mrb[0].mxu0 %v1754
          %v2042 = vpop.f32.mrb[0].mxu0
          %v2043 = vadd.f32 %v1973, %v2042
          %v2044 = vpop.f32.mrb[0].mxu0
          %2045 = vdwg.mxu0
          %2046 = vst [vmem:[#allocation12] sm:$0x3] %v2043
        $region68: #{_lambda_.1} parent=39 // pred_fallthru
          _
        // Predicated region
        $region69: #{_lambda_.1} parent=39 // pred_check
          %p2047 = pneg %p164
        $region70: #{_lambda_.1} parent=39 // pred_check_branch
          %2049 = sbr.rel (%p2047) target = $region72
        $region71: #{_lambda_.1} parent=39 // pred_region
          %s2051 = ssub.s32 32, 32
          %2052 = vsyncadd [#allocation5], %s2051
          %s2053 = smul.addr %s26, 32
          %s2054 = scalar_lea.hbm %s5, %s2053
          %s2056 = sshll.u32 [#allocation12], 4
          %s2057 = int_to_ptr.vmem [resolvable:$true] %s2056
          %2059 = dma.vmem_to_hbm [thread:$0]  %s2057, 32, %s2054, [#allocation5]
        $region72: #{_lambda_.1} parent=39 // pred_fallthru
          _
        // Predicated region
        $region73: #{_lambda_.1} parent=39 // pred_check
          %p2060 = pneg %p164
        $region74: #{_lambda_.1} parent=39 // pred_check_branch
          %2062 = sbr.rel (%p2060) target = $region76
        $region75: #{_lambda_.1} parent=39 // pred_region
          %2063 = dma.done [#allocation5], 32
        $region76: #{_lambda_.1} parent=39 // pred_fallthru
          _
      $region40: #{_lambda_.1} parent=5 // pred_fallthru
        _
      %p2064 = scmp.le.s32.totalorder 2, %s17
      // Predicated region
      $region77: #{_lambda_.1} parent=5 // pred_check
        %p2065 = pneg %p2064
      $region78: #{_lambda_.1} parent=5 // pred_check_branch
        %2067 = sbr.rel (%p2065) target = $region80
      $region79: #{_lambda_.1} parent=5 // pred_region
        %s2068 = ssub.s32 %s17, 2
      $region80: #{_lambda_.1} parent=5 // pred_fallthru
        _
    $region6: #{_lambda_.1} parent=1 // loop_footer
      %s21 = sadd.s32 1, %s17
    $region7: #{_lambda_.1} parent=1 // loop_footer_branch
      %16 = sbr.rel target = $region3
    $region8: #{_lambda_.1} parent=1 // loop_exit
      _
    %2069 = vsyncpa [#allocation4], 1
    %s2070 = scalar_lea.sflag [#allocation4], 1
    %2071 = vsyncpa %s2070, 1
    %2072 = vsyncpa [#allocation7], 1
    %2073 = vsyncpa [#allocation10], 1
    %2074 = vsyncpa [#allocation5], 1
    %s2075 = scalar_lea.sflag [#allocation5], 1
    %2076 = vsyncpa %s2075, 1

</llo_original>
